<compile_context>
chip_gen: v7x
topology: tpu7x:2x2x1
jax: 0.10.0
libtpu: 0.0.40
codegen_flags: <defaults>
</compile_context>

<pallas_src>
import functools

import numpy as np
import jax
import jax.numpy as jnp
from jax import lax
from jax.experimental import pallas as pl
from jax.experimental.pallas import tpu as pltpu


def build_embedding_table() -> jnp.ndarray:
    """Deterministically reproduce the PyTorch weight construction."""
    w = np.array(
        [[1, 0, 0, 0, 0], [0, 1, 0, 0, 0], [0, 0, 1, 0, 0], [0, 0, 0, 1, 0],
         [1, 0, 0, 1, 0], [0, 1, 1, 0, 0], [0, 0, 1, 1, 0], [1, 1, 0, 0, 0],
         [0, 1, 0, 1, 0], [1, 0, 1, 0, 0], [0, 1, 1, 1, 0], [1, 0, 1, 1, 0],
         [1, 1, 0, 1, 0], [1, 1, 1, 0, 0], [1, 1, 1, 1, 0]],
        dtype=np.float32,
    )
    w = w / w.sum(axis=1, keepdims=True)
    w = np.concatenate([w, w, w], axis=0)          # (45, 5)
    w[15:30, 4] = 1.0
    w[30:45, 4] = -1.0
    w = np.concatenate([np.zeros((1, 5), np.float32), w], axis=0)  # (46, 5)
    return jnp.asarray(w)


def _round_up(x: int, m: int) -> int:
    return ((x + m - 1) // m) * m


def embed_kernel(x_ref, wt_ref, o_ref, *, chunk: int):
    # x_ref:  (TB, TL)    int32 — index block (TB batch rows, TL lanes)
    # wt_ref: (C, V)      f32   — transposed table, resident in VMEM
    # o_ref:  (TB, C, TL) f32   — channel-first output block (lane-dense on L)
    TB, TL = x_ref.shape
    C, V = wt_ref.shape
    n_chunks = TL // chunk                           # static

    wt = wt_ref[...]                                 # tiny, lives in vregs
    vocab_iota = lax.broadcasted_iota(jnp.int32, (V, chunk), 0)  # hoisted

    def chunk_body(c, carry):
        start = pl.multiple_of(c * chunk, chunk)
        for b in range(TB):                          # static unroll over rows
            x = x_ref[pl.ds(b, 1), pl.ds(start, chunk)]          # (1, chunk)
            onehot = (x == vocab_iota).astype(jnp.float32)       # (V, chunk)
            # (C, V) @ (V, chunk) -> (C, chunk): lane-dense, no transpose.
            o_ref[b, :, pl.ds(start, chunk)] = jnp.dot(
                wt, onehot,
                preferred_element_type=jnp.float32,
                precision=lax.Precision.HIGHEST)
        return carry

    lax.fori_loop(0, n_chunks, chunk_body, 0, unroll=True)


def nucleotide_embedding(x_idx: jnp.ndarray, table: jnp.ndarray,
                         *, tl_target: int = 8192, chunk: int = 512,
                         tb_rows: int = 8) -> jnp.ndarray:
    """x_idx: (B, L) integer indices. Returns (B, 5, L) float32.

    Per-step working set at full block size (TB=8, TL=8192) is ~5 MiB with
    double buffering — well inside the default scoped VMEM on v5e/v6e/v7x.
    Pass int32 indices to avoid a standalone dtype-conversion pass.
    """
    assert chunk % 128 == 0 and tl_target % chunk == 0
    B, L = x_idx.shape
    V, C = table.shape

    if x_idx.dtype != jnp.int32:
        x_idx = x_idx.astype(jnp.int32)
    wt = jnp.transpose(table).astype(jnp.float32)    # (C, V), ~1 KiB, resident

    # Block sizing: multi-row batch blocks + large L tiles; ragged edges are
    # handled by Pallas boundary clipping (no wrapper pad, no trailing slice).
    TB = B if B < tb_rows else tb_rows
    tl = min(tl_target, _round_up(L, chunk))
    grid_b = pl.cdiv(B, TB)
    num_l = pl.cdiv(L, tl)
    # v7x has 2 TensorCores: keep >=2 steps along a parallel axis if possible.
    if grid_b == 1 and num_l == 1 and tl > chunk:
        tl = _round_up(-(-tl // 2), chunk)
        num_l = pl.cdiv(L, tl)

    kernel = functools.partial(embed_kernel, chunk=chunk)

    out = pl.pallas_call(
        kernel,
        out_shape=jax.ShapeDtypeStruct((B, C, L), jnp.float32),
        grid_spec=pltpu.PrefetchScalarGridSpec(
            num_scalar_prefetch=0,
            grid=(grid_b, num_l),
            in_specs=[
                pl.BlockSpec((TB, tl), lambda b, l: (b, l)),
                pl.BlockSpec((C, V), lambda b, l: (0, 0)),   # constant: resident
            ],
            out_specs=pl.BlockSpec((TB, C, tl), lambda b, l: (b, 0, l)),
        ),
        compiler_params=pltpu.CompilerParams(
            dimension_semantics=("parallel", "parallel")),
        cost_estimate=pl.CostEstimate(
            flops=2 * B * L * V * C,
            transcendentals=0,
            # Output bytes include the 8/5 sublane padding on the store path.
            bytes_accessed=B * L * 4 + B * 8 * L * 4 + V * C * 4),
    )(x_idx, wt)
    return out


if __name__ == "__main__":
    k1, k2 = jax.random.split(jax.random.PRNGKey(0))
    table = build_embedding_table()                  # (46, 5)

    # Small demo shape consistent with the module: (batch, seq) index input.
    B, L = 2, 8
    x = jax.random.randint(k1, (B, L), 0, 46, dtype=jnp.int32)
    out = jax.block_until_ready(nucleotide_embedding(x, table))
    ref = jnp.transpose(jnp.take(table, x, axis=0), (0, 2, 1))
    assert out.shape == (B, 5, L), out.shape
    np.testing.assert_allclose(np.asarray(out), np.asarray(ref),
                               rtol=1e-6, atol=1e-6)

    # Second, non-aligned shape: exercises ragged batch/L tiles and the
    # multi-chunk inner loop with TB=8.
    B2, L2 = 9, 1000
    x2 = jax.random.randint(k2, (B2, L2), 0, 46, dtype=jnp.int32)
    out2 = jax.block_until_ready(nucleotide_embedding(x2, table))
    ref2 = jnp.transpose(jnp.take(table, x2, axis=0), (0, 2, 1))
    assert out2.shape == (B2, 5, L2), out2.shape
    np.testing.assert_allclose(np.asarray(out2), np.asarray(ref2),
                               rtol=1e-6, atol=1e-6)

    print("KERNEL_OK")
</pallas_src>

<mosaic_0001>
module attributes {stable_mosaic.version = 11 : i64} {
  func.func @embed_kernel(%arg0: i32, %arg1: i32, %arg2: memref<2x512xi32, #tpu.memory_space<vmem>>, %arg3: memref<5x46xf32, #tpu.memory_space<vmem>>, %arg4: memref<2x5x512xf32, #tpu.memory_space<vmem>>) attributes {dimension_semantics = [#tpu.dimension_semantics<parallel>, #tpu.dimension_semantics<parallel>], iteration_bounds = array<i64: 1, 1>, scalar_prefetch = 0 : i64, scratch_operands = 0 : i64, tpu.core_type = #tpu.core_type<tc>, window_params = [{transform_indices = @transform_0, window_bounds = array<i64: 2, 512>}, {pipeline_mode = #tpu.pipeline_mode<synchronous>, transform_indices = @transform_1, window_bounds = array<i64: 5, 46>}, {transform_indices = @transform_2, window_bounds = array<i64: 2, 5, 512>}]} {
    %c0 = arith.constant 0 : index
    %c0_0 = arith.constant 0 : index
    %0 = vector.load %arg3[%c0, %c0_0] : memref<5x46xf32, #tpu.memory_space<vmem>>, vector<5x46xf32>
    %1 = tpu.iota {dimensions = array<i32: 0>} : vector<46x512xi32>
    %c0_i32 = arith.constant 0 : i32
    %c512_i32 = arith.constant 512 : i32
    %2 = arith.muli %c0_i32, %c512_i32 : i32
    %3 = tpu.assume_multiple %2, 512 : i32
    %c0_1 = arith.constant 0 : index
    %4 = arith.index_cast %3 : i32 to index
    %5 = vector.load %arg2[%c0_1, %4] : memref<2x512xi32, #tpu.memory_space<vmem>>, vector<1x512xi32>
    %6 = vector.broadcast %5 : vector<1x512xi32> to vector<46x512xi32>
    %7 = arith.cmpi eq, %6, %1 : vector<46x512xi32>
    %8 = arith.extui %7 : vector<46x512xi1> to vector<46x512xi32>
    %9 = arith.sitofp %8 : vector<46x512xi32> to vector<46x512xf32>
    %cst = arith.constant dense<0.000000e+00> : vector<5x512xf32>
    %10 = tpu.matmul %0, %9, %cst {dimension_numbers = #tpu.dot_dimension_numbers<[1], [0], [0], [1], [0, 0, 1, 1], [], []>, precision = #tpu.contract_precision<fp32>} : vector<5x46xf32>, vector<46x512xf32>, vector<5x512xf32> -> vector<5x512xf32>
    %c0_2 = arith.constant 0 : index
    %c0_3 = arith.constant 0 : index
    %11 = arith.index_cast %3 : i32 to index
    %12 = vector.load %arg4[%c0_2, %c0_3, %11] : memref<2x5x512xf32, #tpu.memory_space<vmem>>, vector<1x5x512xf32>
    %13 = vector.shape_cast %12 : vector<1x5x512xf32> to vector<5x512xf32>
    %14 = vector.shape_cast %10 : vector<5x512xf32> to vector<1x5x512xf32>
    tpu.vector_store %arg4[%c0_2, %c0_3, %11], %14 {strides = array<i32>} : memref<2x5x512xf32, #tpu.memory_space<vmem>>, vector<1x5x512xf32>,
    %c1 = arith.constant 1 : index
    %15 = arith.index_cast %3 : i32 to index
    %16 = vector.load %arg2[%c1, %15] : memref<2x512xi32, #tpu.memory_space<vmem>>, vector<1x512xi32>
    %17 = vector.broadcast %16 : vector<1x512xi32> to vector<46x512xi32>
    %18 = arith.cmpi eq, %17, %1 : vector<46x512xi32>
    %19 = arith.extui %18 : vector<46x512xi1> to vector<46x512xi32>
    %20 = arith.sitofp %19 : vector<46x512xi32> to vector<46x512xf32>
    %cst_4 = arith.constant dense<0.000000e+00> : vector<5x512xf32>
    %21 = tpu.matmul %0, %20, %cst_4 {dimension_numbers = #tpu.dot_dimension_numbers<[1], [0], [0], [1], [0, 0, 1, 1], [], []>, precision = #tpu.contract_precision<fp32>} : vector<5x46xf32>, vector<46x512xf32>, vector<5x512xf32> -> vector<5x512xf32>
    %c1_5 = arith.constant 1 : index
    %c0_6 = arith.constant 0 : index
    %22 = arith.index_cast %3 : i32 to index
    %23 = vector.load %arg4[%c1_5, %c0_6, %22] : memref<2x5x512xf32, #tpu.memory_space<vmem>>, vector<1x5x512xf32>
    %24 = vector.shape_cast %23 : vector<1x5x512xf32> to vector<5x512xf32>
    %25 = vector.shape_cast %21 : vector<5x512xf32> to vector<1x5x512xf32>
    tpu.vector_store %arg4[%c1_5, %c0_6, %22], %25 {strides = array<i32>} : memref<2x5x512xf32, #tpu.memory_space<vmem>>, vector<1x5x512xf32>,
    %c1_i32 = arith.constant 1 : i32
    return
  }
  func.func @transform_0(%arg0: i32, %arg1: i32) -> (i32, i32) {
    %c0_i32 = arith.constant 0 : i32
    return %arg0, %arg1 : i32, i32
  }
  func.func @transform_1(%arg0: i32, %arg1: i32) -> (i32, i32) {
    %c0_i32 = arith.constant 0 : i32
    %c0_i32_0 = arith.constant 0 : i32
    %c0_i32_1 = arith.constant 0 : i32
    return %c0_i32, %c0_i32_0 : i32, i32
  }
  func.func @transform_2(%arg0: i32, %arg1: i32) -> (i32, i32, i32) {
    %c0_i32 = arith.constant 0 : i32
    %c0_i32_0 = arith.constant 0 : i32
    return %arg0, %c0_i32, %arg1 : i32, i32, i32
  }
}

</mosaic_0001>

<llo_original>
// kernel: tpu_custom_call.1
$region0: #{tpu_custom_call.1}
  #allocation0 [shape = 'u32[]', space=smem, size = 0x4, offset = 0x4, fixed_abs, tag = 'smem constant byte address 0x4 - core index']
  #allocation1 [shape = 'u32[144,128]{1,0:T(1,128)}', space=vmem, size = 0x12000, scoped, tag = 'internal scratch']
  %s0 = inlined_call_operand.hbm [shape: s32[2,8], index: 0, kind: input, shape index: {}]
  %s1 = inlined_call_operand.hbm [shape: f32[5,46], index: 1, kind: input, shape index: {}]
  %s2 = inlined_call_operand.vmem [shape: f32[2,5,8], index: 2, kind: output, shape index: {}]
  %s3 = sld [smem:[#allocation0]]
  $region60: #{tpu_custom_call.1} parent=0
    _
  %s5 = ssub.s32 1, %s3
  %s6 = scalar_select 0, %s5, %s3
  $region1: #{tpu_custom_call.1} parent=0
    #allocation2 [shape = 'u8[4096]{0}', space=vmem, size = 0x1000, scoped, tag = 'input window, operand 0, single buffered']
    #allocation3 [shape = 's32[1]{0}', space=sflag, size = 0x4, scoped, tag = 'scoped memory for tpu_custom_call.1']
    #allocation4 [shape = 'u8[4096]{0}', space=vmem, size = 0x1000, scoped, tag = 'input window, operand 1, single buffered']
    #allocation5 [shape = 's32[1]{0}', space=sflag, size = 0x4, scoped, tag = 'scoped memory for tpu_custom_call.1']
    #allocation6 [shape = 'u8[32768]{0}', space=vmem, size = 0x8000, scoped, tag = 'output window, operand 0, single buffered']
    %7 = vsyncpa [#allocation3], 0
    %8 = vsyncpa [#allocation5], 0
    // Predicated region
    $region2: #{tpu_custom_call.1} parent=1 // pred_check
      _
    $region3: #{tpu_custom_call.1} parent=1 // pred_check_branch
      %10 = sbr.rel (0) target = $region5
    $region4: #{tpu_custom_call.1} parent=1 // pred_region
      %s12 = ssub.s32 128, 32
      %13 = vsyncadd [#allocation3], %s12
      %s15 = sshll.u32 [#allocation2], 4
      %s16 = int_to_ptr.vmem [resolvable:$true] %s15
      %18 = dma.hbm_to_vmem [thread:$0]  %s0, 32, %s16, [#allocation3]
    $region5: #{tpu_custom_call.1} parent=1 // pred_fallthru
      _
    // Predicated region
    $region6: #{tpu_custom_call.1} parent=1 // pred_check
      _
    $region7: #{tpu_custom_call.1} parent=1 // pred_check_branch
      %20 = sbr.rel (0) target = $region9
    $region8: #{tpu_custom_call.1} parent=1 // pred_region
      %s22 = ssub.s32 128, 128
      %23 = vsyncadd [#allocation5], %s22
      %s25 = sshll.u32 [#allocation4], 4
      %s26 = int_to_ptr.vmem [resolvable:$true] %s25
      %28 = dma.hbm_to_vmem [thread:$0]  %s1, 128, %s26, [#allocation5]
    $region9: #{tpu_custom_call.1} parent=1 // pred_fallthru
      _
    // Predicated region
    $region10: #{tpu_custom_call.1} parent=1 // pred_check
      _
    $region11: #{tpu_custom_call.1} parent=1 // pred_check_branch
      %30 = sbr.rel (0) target = $region13
    $region12: #{tpu_custom_call.1} parent=1 // pred_region
      %31 = dma.done [#allocation3], 128
    $region13: #{tpu_custom_call.1} parent=1 // pred_fallthru
      _
    // Predicated region
    $region14: #{tpu_custom_call.1} parent=1 // pred_check
      _
    $region15: #{tpu_custom_call.1} parent=1 // pred_check_branch
      %33 = sbr.rel (0) target = $region17
    $region16: #{tpu_custom_call.1} parent=1 // pred_region
      %34 = dma.done [#allocation5], 128
    $region17: #{tpu_custom_call.1} parent=1 // pred_fallthru
      _
    %v35 = vld [vmem:[#allocation4] sm:$0x1f]
    %v36 = vlaneseq
    %v37 = vshrl.u32 %v36, 7
    %v38 = vadd.s32 %v37, 8
    %v39 = vadd.s32 %v37, 16
    %v40 = vadd.s32 %v37, 24
    %v41 = vadd.s32 %v37, 32
    %v42 = vadd.s32 %v37, 40
    %v43 = vld [vmem:[#allocation2] ss:$2 sm:$0xf]
    %v44 = vlaneseq
    %v45 = vshrl.u32 %v44, 7
    %v46 = vsub.s32 0, %v45
    %v47 = vrot.slane %v43, %v46
    %v48 = vlaneseq
    %v49 = vshrl.u32 %v48, 7
    %v50 = vsub.s32 1, %v49
    %v51 = vrot.slane %v43, %v50
    %v52 = vlaneseq
    %v53 = vshrl.u32 %v52, 7
    %v54 = vsub.s32 2, %v53
    %v55 = vrot.slane %v43, %v54
    %v56 = vlaneseq
    %v57 = vshrl.u32 %v56, 7
    %v58 = vsub.s32 3, %v57
    %v59 = vrot.slane %v43, %v58
    %vm60 = vcmp.eq.s32.totalorder %v47, %v37
    %vm61 = vcmp.eq.s32.totalorder %v51, %v37
    %vm62 = vcmp.eq.s32.totalorder %v55, %v37
    %vm63 = vcmp.eq.s32.totalorder %v59, %v37
    %vm64 = vcmp.eq.s32.totalorder %v47, %v38
    %vm65 = vcmp.eq.s32.totalorder %v51, %v38
    %vm66 = vcmp.eq.s32.totalorder %v55, %v38
    %vm67 = vcmp.eq.s32.totalorder %v59, %v38
    %vm68 = vcmp.eq.s32.totalorder %v47, %v39
    %vm69 = vcmp.eq.s32.totalorder %v51, %v39
    %vm70 = vcmp.eq.s32.totalorder %v55, %v39
    %vm71 = vcmp.eq.s32.totalorder %v59, %v39
    %vm72 = vcmp.eq.s32.totalorder %v47, %v40
    %vm73 = vcmp.eq.s32.totalorder %v51, %v40
    %vm74 = vcmp.eq.s32.totalorder %v55, %v40
    %vm75 = vcmp.eq.s32.totalorder %v59, %v40
    %vm76 = vcmp.eq.s32.totalorder %v47, %v41
    %vm77 = vcmp.eq.s32.totalorder %v51, %v41
    %vm78 = vcmp.eq.s32.totalorder %v55, %v41
    %vm79 = vcmp.eq.s32.totalorder %v59, %v41
    %vm80 = vcmp.eq.s32.totalorder %v47, %v42
    %vm81 = vcmp.eq.s32.totalorder %v51, %v42
    %vm82 = vcmp.eq.s32.totalorder %v55, %v42
    %vm83 = vcmp.eq.s32.totalorder %v59, %v42
    %v84 = vsel %vm60, 1, 0
    %v85 = vsel %vm61, 1, 0
    %v86 = vsel %vm62, 1, 0
    %v87 = vsel %vm63, 1, 0
    %v88 = vsel %vm64, 1, 0
    %v89 = vsel %vm65, 1, 0
    %v90 = vsel %vm66, 1, 0
    %v91 = vsel %vm67, 1, 0
    %v92 = vsel %vm68, 1, 0
    %v93 = vsel %vm69, 1, 0
    %v94 = vsel %vm70, 1, 0
    %v95 = vsel %vm71, 1, 0
    %v96 = vsel %vm72, 1, 0
    %v97 = vsel %vm73, 1, 0
    %v98 = vsel %vm74, 1, 0
    %v99 = vsel %vm75, 1, 0
    %v100 = vsel %vm76, 1, 0
    %v101 = vsel %vm77, 1, 0
    %v102 = vsel %vm78, 1, 0
    %v103 = vsel %vm79, 1, 0
    %v104 = vsel %vm80, 1, 0
    %v105 = vsel %vm81, 1, 0
    %v106 = vsel %vm82, 1, 0
    %v107 = vsel %vm83, 1, 0
    %v108 = vcvt.s32.f32 %v84
    %v109 = vcvt.s32.f32 %v85
    %v110 = vcvt.s32.f32 %v86
    %v111 = vcvt.s32.f32 %v87
    %v112 = vcvt.s32.f32 %v88
    %v113 = vcvt.s32.f32 %v89
    %v114 = vcvt.s32.f32 %v90
    %v115 = vcvt.s32.f32 %v91
    %v116 = vcvt.s32.f32 %v92
    %v117 = vcvt.s32.f32 %v93
    %v118 = vcvt.s32.f32 %v94
    %v119 = vcvt.s32.f32 %v95
    %v120 = vcvt.s32.f32 %v96
    %v121 = vcvt.s32.f32 %v97
    %v122 = vcvt.s32.f32 %v98
    %v123 = vcvt.s32.f32 %v99
    %v124 = vcvt.s32.f32 %v100
    %v125 = vcvt.s32.f32 %v101
    %v126 = vcvt.s32.f32 %v102
    %v127 = vcvt.s32.f32 %v103
    %v128 = vcvt.s32.f32 %v104
    %v129 = vcvt.s32.f32 %v105
    %v130 = vcvt.s32.f32 %v106
    %v131 = vcvt.s32.f32 %v107
    %vm132 = vcmask 375808
    %v134 = vsel %vm132, %v35, 0
    %vm136 = vcmask 1045504
    %v138 = vsel %vm136, %v128, 0
    %v141 = vsel %vm136, %v129, 0
    %v144 = vsel %vm136, %v130, 0
    %v147 = vsel %vm136, %v131, 0
    %v149 = vand.u32 %v109, 4294901760
    %150 = vmatprep.subr.mxu0 %v149
    %v151 = vand.u32 %v108, 4294901760
    %152 = vmatpush1.msra.mxu0 %v151
    %v153 = vand.u32 %v113, 4294901760
    %154 = vmatprep.subr.mxu0 %v153
    %v155 = vand.u32 %v112, 4294901760
    %156 = vmatpush1.msra.mxu0 %v155
    %v157 = vand.u32 %v117, 4294901760
    %158 = vmatprep.subr.mxu0 %v157
    %v159 = vand.u32 %v116, 4294901760
    %160 = vmatpush1.msra.mxu0 %v159
    %v161 = vand.u32 %v121, 4294901760
    %162 = vmatprep.subr.mxu0 %v161
    %v163 = vand.u32 %v120, 4294901760
    %164 = vmatpush1.msra.mxu0 %v163
    %v165 = vand.u32 %v125, 4294901760
    %166 = vmatprep.subr.mxu0 %v165
    %v167 = vand.u32 %v124, 4294901760
    %168 = vmatpush1.msra.mxu0 %v167
    %v169 = vand.u32 %v141, 4294901760
    %170 = vmatprep.subr.mxu0 %v169
    %v171 = vand.u32 %v138, 4294901760
    %172 = vmatpush1.msra.mxu0 %v171
    %173 = vmatprep.subr.mxu0 0.0
    %174 = vmatpush1.msra.mxu0 0.0
    %175 = vmatprep.subr.mxu0 0.0
    %176 = vmatpush1.msra.mxu0 0.0
    %177 = vmatprep.subr.mxu0 0.0
    %178 = vmatpush1.msra.mxu0 0.0
    %179 = vmatprep.subr.mxu0 0.0
    %180 = vmatpush1.msra.mxu0 0.0
    %181 = vmatprep.subr.mxu0 0.0
    %182 = vmatpush1.msra.mxu0 0.0
    %183 = vmatprep.subr.mxu0 0.0
    %184 = vmatpush1.msra.mxu0 0.0
    %185 = vmatprep.subr.mxu0 0.0
    %186 = vmatpush1.msra.mxu0 0.0
    %187 = vmatprep.subr.mxu0 0.0
    %188 = vmatpush1.msra.mxu0 0.0
    %189 = vmatprep.subr.mxu0 0.0
    %190 = vmatpush1.msra.mxu0 0.0
    %191 = vmatprep.subr.mxu0 0.0
    %192 = vmatpush1.msra.mxu0 0.0
    %193 = vmatprep.subr.mxu0 0.0
    %194 = vmatpush1.msra.mxu0 0.0
    %195 = vmatprep.subr.mxu0 0.0
    %196 = vmatpush1.msra.mxu0 0.0
    %197 = vmatprep.subr.mxu0 0.0
    %198 = vmatpush1.msra.mxu0 0.0
    %199 = vmatprep.subr.mxu0 0.0
    %200 = vmatpush1.msra.mxu0 0.0
    %201 = vmatprep.subr.mxu0 0.0
    %202 = vmatpush1.msra.mxu0 0.0
    %203 = vmatprep.subr.mxu0 0.0
    %204 = vmatpush1.msra.mxu0 0.0
    %205 = vmatprep.subr.mxu0 0.0
    %206 = vmatpush1.msra.mxu0 0.0
    %207 = vmatprep.subr.mxu0 0.0
    %208 = vmatpush1.msra.mxu0 0.0
    %209 = vmatprep.subr.mxu0 0.0
    %210 = vmatpush1.msra.mxu0 0.0
    %211 = vmatprep.subr.mxu0 0.0
    %212 = vmatpush1.msra.mxu0 0.0
    %213 = vmatprep.subr.mxu0 0.0
    %214 = vmatpush1.msra.mxu0 0.0
    %215 = vmatprep.subr.mxu0 0.0
    %216 = vmatpush1.msra.mxu0 0.0
    %217 = vmatprep.subr.mxu0 0.0
    %218 = vmatpush1.msra.mxu0 0.0
    %219 = vmatprep.subr.mxu0 0.0
    %220 = vmatpush1.msra.mxu0 0.0
    %221 = vmatprep.subr.mxu0 0.0
    %222 = vmatpush1.msra.mxu0 0.0
    %223 = vmatprep.subr.mxu0 0.0
    %224 = vmatpush1.msra.mxu0 0.0
    %225 = vmatprep.mubr.f32.mxu0 0.0
    %v226 = vand.u32 %v134, 4294901760
    %v227 = vsub.f32 %v134, %v226
    %v228 = vand.u32 %v227, 4294901760
    %v229 = vsub.f32 %v227, %v228
    %v230 = vand.u32 %v229, 4294901760
    %231 = vmatmul.mubr.f32.gmra.mrb[0].mxu0 %v230
    %v232 = vpop.f32.mrb[0].mxu0
    %v233 = vadd.f32 0.0, %v232
    %v234 = vpop.f32.mrb[0].mxu0
    %v235 = vadd.f32 0.0, %v234
    %236 = vdwg.mxu0
    %v237 = vand.u32 %v109, 4294901760
    %v238 = vsub.f32 %v109, %v237
    %v239 = vand.u32 %v238, 4294901760
    %v240 = vsub.f32 %v238, %v239
    %v241 = vand.u32 %v240, 4294901760
    %242 = vmatprep.subr.mxu0 %v241
    %v243 = vand.u32 %v108, 4294901760
    %v244 = vsub.f32 %v108, %v243
    %v245 = vand.u32 %v244, 4294901760
    %v246 = vsub.f32 %v244, %v245
    %v247 = vand.u32 %v246, 4294901760
    %248 = vmatpush1.msra.mxu0 %v247
    %v249 = vand.u32 %v113, 4294901760
    %v250 = vsub.f32 %v113, %v249
    %v251 = vand.u32 %v250, 4294901760
    %v252 = vsub.f32 %v250, %v251
    %v253 = vand.u32 %v252, 4294901760
    %254 = vmatprep.subr.mxu0 %v253
    %v255 = vand.u32 %v112, 4294901760
    %v256 = vsub.f32 %v112, %v255
    %v257 = vand.u32 %v256, 4294901760
    %v258 = vsub.f32 %v256, %v257
    %v259 = vand.u32 %v258, 4294901760
    %260 = vmatpush1.msra.mxu0 %v259
    %v261 = vand.u32 %v117, 4294901760
    %v262 = vsub.f32 %v117, %v261
    %v263 = vand.u32 %v262, 4294901760
    %v264 = vsub.f32 %v262, %v263
    %v265 = vand.u32 %v264, 4294901760
    %266 = vmatprep.subr.mxu0 %v265
    %v267 = vand.u32 %v116, 4294901760
    %v268 = vsub.f32 %v116, %v267
    %v269 = vand.u32 %v268, 4294901760
    %v270 = vsub.f32 %v268, %v269
    %v271 = vand.u32 %v270, 4294901760
    %272 = vmatpush1.msra.mxu0 %v271
    %v273 = vand.u32 %v121, 4294901760
    %v274 = vsub.f32 %v121, %v273
    %v275 = vand.u32 %v274, 4294901760
    %v276 = vsub.f32 %v274, %v275
    %v277 = vand.u32 %v276, 4294901760
    %278 = vmatprep.subr.mxu0 %v277
    %v279 = vand.u32 %v120, 4294901760
    %v280 = vsub.f32 %v120, %v279
    %v281 = vand.u32 %v280, 4294901760
    %v282 = vsub.f32 %v280, %v281
    %v283 = vand.u32 %v282, 4294901760
    %284 = vmatpush1.msra.mxu0 %v283
    %v285 = vand.u32 %v125, 4294901760
    %v286 = vsub.f32 %v125, %v285
    %v287 = vand.u32 %v286, 4294901760
    %v288 = vsub.f32 %v286, %v287
    %v289 = vand.u32 %v288, 4294901760
    %290 = vmatprep.subr.mxu0 %v289
    %v291 = vand.u32 %v124, 4294901760
    %v292 = vsub.f32 %v124, %v291
    %v293 = vand.u32 %v292, 4294901760
    %v294 = vsub.f32 %v292, %v293
    %v295 = vand.u32 %v294, 4294901760
    %296 = vmatpush1.msra.mxu0 %v295
    %v297 = vand.u32 %v141, 4294901760
    %v298 = vsub.f32 %v141, %v297
    %v299 = vand.u32 %v298, 4294901760
    %v300 = vsub.f32 %v298, %v299
    %v301 = vand.u32 %v300, 4294901760
    %302 = vmatprep.subr.mxu0 %v301
    %v303 = vand.u32 %v138, 4294901760
    %v304 = vsub.f32 %v138, %v303
    %v305 = vand.u32 %v304, 4294901760
    %v306 = vsub.f32 %v304, %v305
    %v307 = vand.u32 %v306, 4294901760
    %308 = vmatpush1.msra.mxu0 %v307
    %309 = vmatprep.subr.mxu0 0.0
    %310 = vmatpush1.msra.mxu0 0.0
    %311 = vmatprep.subr.mxu0 0.0
    %312 = vmatpush1.msra.mxu0 0.0
    %313 = vmatprep.subr.mxu0 0.0
    %314 = vmatpush1.msra.mxu0 0.0
    %315 = vmatprep.subr.mxu0 0.0
    %316 = vmatpush1.msra.mxu0 0.0
    %317 = vmatprep.subr.mxu0 0.0
    %318 = vmatpush1.msra.mxu0 0.0
    %319 = vmatprep.subr.mxu0 0.0
    %320 = vmatpush1.msra.mxu0 0.0
    %321 = vmatprep.subr.mxu0 0.0
    %322 = vmatpush1.msra.mxu0 0.0
    %323 = vmatprep.subr.mxu0 0.0
    %324 = vmatpush1.msra.mxu0 0.0
    %325 = vmatprep.subr.mxu0 0.0
    %326 = vmatpush1.msra.mxu0 0.0
    %327 = vmatprep.subr.mxu0 0.0
    %328 = vmatpush1.msra.mxu0 0.0
    %329 = vmatprep.subr.mxu0 0.0
    %330 = vmatpush1.msra.mxu0 0.0
    %331 = vmatprep.subr.mxu0 0.0
    %332 = vmatpush1.msra.mxu0 0.0
    %333 = vmatprep.subr.mxu0 0.0
    %334 = vmatpush1.msra.mxu0 0.0
    %335 = vmatprep.subr.mxu0 0.0
    %336 = vmatpush1.msra.mxu0 0.0
    %337 = vmatprep.subr.mxu0 0.0
    %338 = vmatpush1.msra.mxu0 0.0
    %339 = vmatprep.subr.mxu0 0.0
    %340 = vmatpush1.msra.mxu0 0.0
    %341 = vmatprep.subr.mxu0 0.0
    %342 = vmatpush1.msra.mxu0 0.0
    %343 = vmatprep.subr.mxu0 0.0
    %344 = vmatpush1.msra.mxu0 0.0
    %345 = vmatprep.subr.mxu0 0.0
    %346 = vmatpush1.msra.mxu0 0.0
    %347 = vmatprep.subr.mxu0 0.0
    %348 = vmatpush1.msra.mxu0 0.0
    %349 = vmatprep.subr.mxu0 0.0
    %350 = vmatpush1.msra.mxu0 0.0
    %351 = vmatprep.subr.mxu0 0.0
    %352 = vmatpush1.msra.mxu0 0.0
    %353 = vmatprep.subr.mxu0 0.0
    %354 = vmatpush1.msra.mxu0 0.0
    %355 = vmatprep.subr.mxu0 0.0
    %356 = vmatpush1.msra.mxu0 0.0
    %357 = vmatprep.subr.mxu0 0.0
    %358 = vmatpush1.msra.mxu0 0.0
    %359 = vmatprep.subr.mxu0 0.0
    %360 = vmatpush1.msra.mxu0 0.0
    %361 = vmatprep.mubr.f32.mxu0 0.0
    %v362 = vand.u32 %v134, 4294901760
    %363 = vmatmul.mubr.f32.gmra.mrb[0].mxu0 %v362
    %v364 = vpop.f32.mrb[0].mxu0
    %v365 = vadd.f32 %v233, %v364
    %v366 = vpop.f32.mrb[0].mxu0
    %v367 = vadd.f32 %v235, %v366
    %368 = vdwg.mxu0
    %v369 = vand.u32 %v109, 4294901760
    %v370 = vsub.f32 %v109, %v369
    %371 = vmatprep.subr.mxu0 %v370
    %v372 = vand.u32 %v108, 4294901760
    %v373 = vsub.f32 %v108, %v372
    %374 = vmatpush1.msra.mxu0 %v373
    %v375 = vand.u32 %v113, 4294901760
    %v376 = vsub.f32 %v113, %v375
    %377 = vmatprep.subr.mxu0 %v376
    %v378 = vand.u32 %v112, 4294901760
    %v379 = vsub.f32 %v112, %v378
    %380 = vmatpush1.msra.mxu0 %v379
    %v381 = vand.u32 %v117, 4294901760
    %v382 = vsub.f32 %v117, %v381
    %383 = vmatprep.subr.mxu0 %v382
    %v384 = vand.u32 %v116, 4294901760
    %v385 = vsub.f32 %v116, %v384
    %386 = vmatpush1.msra.mxu0 %v385
    %v387 = vand.u32 %v121, 4294901760
    %v388 = vsub.f32 %v121, %v387
    %389 = vmatprep.subr.mxu0 %v388
    %v390 = vand.u32 %v120, 4294901760
    %v391 = vsub.f32 %v120, %v390
    %392 = vmatpush1.msra.mxu0 %v391
    %v393 = vand.u32 %v125, 4294901760
    %v394 = vsub.f32 %v125, %v393
    %395 = vmatprep.subr.mxu0 %v394
    %v396 = vand.u32 %v124, 4294901760
    %v397 = vsub.f32 %v124, %v396
    %398 = vmatpush1.msra.mxu0 %v397
    %v399 = vand.u32 %v141, 4294901760
    %v400 = vsub.f32 %v141, %v399
    %401 = vmatprep.subr.mxu0 %v400
    %v402 = vand.u32 %v138, 4294901760
    %v403 = vsub.f32 %v138, %v402
    %404 = vmatpush1.msra.mxu0 %v403
    %405 = vmatprep.subr.mxu0 0.0
    %406 = vmatpush1.msra.mxu0 0.0
    %407 = vmatprep.subr.mxu0 0.0
    %408 = vmatpush1.msra.mxu0 0.0
    %409 = vmatprep.subr.mxu0 0.0
    %410 = vmatpush1.msra.mxu0 0.0
    %411 = vmatprep.subr.mxu0 0.0
    %412 = vmatpush1.msra.mxu0 0.0
    %413 = vmatprep.subr.mxu0 0.0
    %414 = vmatpush1.msra.mxu0 0.0
    %415 = vmatprep.subr.mxu0 0.0
    %416 = vmatpush1.msra.mxu0 0.0
    %417 = vmatprep.subr.mxu0 0.0
    %418 = vmatpush1.msra.mxu0 0.0
    %419 = vmatprep.subr.mxu0 0.0
    %420 = vmatpush1.msra.mxu0 0.0
    %421 = vmatprep.subr.mxu0 0.0
    %422 = vmatpush1.msra.mxu0 0.0
    %423 = vmatprep.subr.mxu0 0.0
    %424 = vmatpush1.msra.mxu0 0.0
    %425 = vmatprep.subr.mxu0 0.0
    %426 = vmatpush1.msra.mxu0 0.0
    %427 = vmatprep.subr.mxu0 0.0
    %428 = vmatpush1.msra.mxu0 0.0
    %429 = vmatprep.subr.mxu0 0.0
    %430 = vmatpush1.msra.mxu0 0.0
    %431 = vmatprep.subr.mxu0 0.0
    %432 = vmatpush1.msra.mxu0 0.0
    %433 = vmatprep.subr.mxu0 0.0
    %434 = vmatpush1.msra.mxu0 0.0
    %435 = vmatprep.subr.mxu0 0.0
    %436 = vmatpush1.msra.mxu0 0.0
    %437 = vmatprep.subr.mxu0 0.0
    %438 = vmatpush1.msra.mxu0 0.0
    %439 = vmatprep.subr.mxu0 0.0
    %440 = vmatpush1.msra.mxu0 0.0
    %441 = vmatprep.subr.mxu0 0.0
    %442 = vmatpush1.msra.mxu0 0.0
    %443 = vmatprep.subr.mxu0 0.0
    %444 = vmatpush1.msra.mxu0 0.0
    %445 = vmatprep.subr.mxu0 0.0
    %446 = vmatpush1.msra.mxu0 0.0
    %447 = vmatprep.subr.mxu0 0.0
    %448 = vmatpush1.msra.mxu0 0.0
    %449 = vmatprep.subr.mxu0 0.0
    %450 = vmatpush1.msra.mxu0 0.0
    %451 = vmatprep.subr.mxu0 0.0
    %452 = vmatpush1.msra.mxu0 0.0
    %453 = vmatprep.subr.mxu0 0.0
    %454 = vmatpush1.msra.mxu0 0.0
    %455 = vmatprep.subr.mxu0 0.0
    %456 = vmatpush1.msra.mxu0 0.0
    %457 = vmatprep.mubr.f32.mxu0 0.0
    %v458 = vand.u32 %v134, 4294901760
    %v459 = vsub.f32 %v134, %v458
    %460 = vmatmul.mubr.f32.gmra.mrb[0].mxu0 %v459
    %v461 = vpop.f32.mrb[0].mxu0
    %v462 = vadd.f32 %v365, %v461
    %v463 = vpop.f32.mrb[0].mxu0
    %v464 = vadd.f32 %v367, %v463
    %465 = vdwg.mxu0
    %v466 = vand.u32 %v109, 4294901760
    %467 = vmatprep.subr.mxu0 %v466
    %v468 = vand.u32 %v108, 4294901760
    %469 = vmatpush1.msra.mxu0 %v468
    %v470 = vand.u32 %v113, 4294901760
    %471 = vmatprep.subr.mxu0 %v470
    %v472 = vand.u32 %v112, 4294901760
    %473 = vmatpush1.msra.mxu0 %v472
    %v474 = vand.u32 %v117, 4294901760
    %475 = vmatprep.subr.mxu0 %v474
    %v476 = vand.u32 %v116, 4294901760
    %477 = vmatpush1.msra.mxu0 %v476
    %v478 = vand.u32 %v121, 4294901760
    %479 = vmatprep.subr.mxu0 %v478
    %v480 = vand.u32 %v120, 4294901760
    %481 = vmatpush1.msra.mxu0 %v480
    %v482 = vand.u32 %v125, 4294901760
    %483 = vmatprep.subr.mxu0 %v482
    %v484 = vand.u32 %v124, 4294901760
    %485 = vmatpush1.msra.mxu0 %v484
    %v486 = vand.u32 %v141, 4294901760
    %487 = vmatprep.subr.mxu0 %v486
    %v488 = vand.u32 %v138, 4294901760
    %489 = vmatpush1.msra.mxu0 %v488
    %490 = vmatprep.subr.mxu0 0.0
    %491 = vmatpush1.msra.mxu0 0.0
    %492 = vmatprep.subr.mxu0 0.0
    %493 = vmatpush1.msra.mxu0 0.0
    %494 = vmatprep.subr.mxu0 0.0
    %495 = vmatpush1.msra.mxu0 0.0
    %496 = vmatprep.subr.mxu0 0.0
    %497 = vmatpush1.msra.mxu0 0.0
    %498 = vmatprep.subr.mxu0 0.0
    %499 = vmatpush1.msra.mxu0 0.0
    %500 = vmatprep.subr.mxu0 0.0
    %501 = vmatpush1.msra.mxu0 0.0
    %502 = vmatprep.subr.mxu0 0.0
    %503 = vmatpush1.msra.mxu0 0.0
    %504 = vmatprep.subr.mxu0 0.0
    %505 = vmatpush1.msra.mxu0 0.0
    %506 = vmatprep.subr.mxu0 0.0
    %507 = vmatpush1.msra.mxu0 0.0
    %508 = vmatprep.subr.mxu0 0.0
    %509 = vmatpush1.msra.mxu0 0.0
    %510 = vmatprep.subr.mxu0 0.0
    %511 = vmatpush1.msra.mxu0 0.0
    %512 = vmatprep.subr.mxu0 0.0
    %513 = vmatpush1.msra.mxu0 0.0
    %514 = vmatprep.subr.mxu0 0.0
    %515 = vmatpush1.msra.mxu0 0.0
    %516 = vmatprep.subr.mxu0 0.0
    %517 = vmatpush1.msra.mxu0 0.0
    %518 = vmatprep.subr.mxu0 0.0
    %519 = vmatpush1.msra.mxu0 0.0
    %520 = vmatprep.subr.mxu0 0.0
    %521 = vmatpush1.msra.mxu0 0.0
    %522 = vmatprep.subr.mxu0 0.0
    %523 = vmatpush1.msra.mxu0 0.0
    %524 = vmatprep.subr.mxu0 0.0
    %525 = vmatpush1.msra.mxu0 0.0
    %526 = vmatprep.subr.mxu0 0.0
    %527 = vmatpush1.msra.mxu0 0.0
    %528 = vmatprep.subr.mxu0 0.0
    %529 = vmatpush1.msra.mxu0 0.0
    %530 = vmatprep.subr.mxu0 0.0
    %531 = vmatpush1.msra.mxu0 0.0
    %532 = vmatprep.subr.mxu0 0.0
    %533 = vmatpush1.msra.mxu0 0.0
    %534 = vmatprep.subr.mxu0 0.0
    %535 = vmatpush1.msra.mxu0 0.0
    %536 = vmatprep.subr.mxu0 0.0
    %537 = vmatpush1.msra.mxu0 0.0
    %538 = vmatprep.subr.mxu0 0.0
    %539 = vmatpush1.msra.mxu0 0.0
    %540 = vmatprep.subr.mxu0 0.0
    %541 = vmatpush1.msra.mxu0 0.0
    %542 = vmatprep.mubr.f32.mxu0 0.0
    %v543 = vand.u32 %v134, 4294901760
    %v544 = vsub.f32 %v134, %v543
    %v545 = vand.u32 %v544, 4294901760
    %546 = vmatmul.mubr.f32.gmra.mrb[0].mxu0 %v545
    %v547 = vpop.f32.mrb[0].mxu0
    %v548 = vadd.f32 %v462, %v547
    %v549 = vpop.f32.mrb[0].mxu0
    %v550 = vadd.f32 %v464, %v549
    %551 = vdwg.mxu0
    %v552 = vand.u32 %v109, 4294901760
    %v553 = vsub.f32 %v109, %v552
    %v554 = vand.u32 %v553, 4294901760
    %555 = vmatprep.subr.mxu0 %v554
    %v556 = vand.u32 %v108, 4294901760
    %v557 = vsub.f32 %v108, %v556
    %v558 = vand.u32 %v557, 4294901760
    %559 = vmatpush1.msra.mxu0 %v558
    %v560 = vand.u32 %v113, 4294901760
    %v561 = vsub.f32 %v113, %v560
    %v562 = vand.u32 %v561, 4294901760
    %563 = vmatprep.subr.mxu0 %v562
    %v564 = vand.u32 %v112, 4294901760
    %v565 = vsub.f32 %v112, %v564
    %v566 = vand.u32 %v565, 4294901760
    %567 = vmatpush1.msra.mxu0 %v566
    %v568 = vand.u32 %v117, 4294901760
    %v569 = vsub.f32 %v117, %v568
    %v570 = vand.u32 %v569, 4294901760
    %571 = vmatprep.subr.mxu0 %v570
    %v572 = vand.u32 %v116, 4294901760
    %v573 = vsub.f32 %v116, %v572
    %v574 = vand.u32 %v573, 4294901760
    %575 = vmatpush1.msra.mxu0 %v574
    %v576 = vand.u32 %v121, 4294901760
    %v577 = vsub.f32 %v121, %v576
    %v578 = vand.u32 %v577, 4294901760
    %579 = vmatprep.subr.mxu0 %v578
    %v580 = vand.u32 %v120, 4294901760
    %v581 = vsub.f32 %v120, %v580
    %v582 = vand.u32 %v581, 4294901760
    %583 = vmatpush1.msra.mxu0 %v582
    %v584 = vand.u32 %v125, 4294901760
    %v585 = vsub.f32 %v125, %v584
    %v586 = vand.u32 %v585, 4294901760
    %587 = vmatprep.subr.mxu0 %v586
    %v588 = vand.u32 %v124, 4294901760
    %v589 = vsub.f32 %v124, %v588
    %v590 = vand.u32 %v589, 4294901760
    %591 = vmatpush1.msra.mxu0 %v590
    %v592 = vand.u32 %v141, 4294901760
    %v593 = vsub.f32 %v141, %v592
    %v594 = vand.u32 %v593, 4294901760
    %595 = vmatprep.subr.mxu0 %v594
    %v596 = vand.u32 %v138, 4294901760
    %v597 = vsub.f32 %v138, %v596
    %v598 = vand.u32 %v597, 4294901760
    %599 = vmatpush1.msra.mxu0 %v598
    %600 = vmatprep.subr.mxu0 0.0
    %601 = vmatpush1.msra.mxu0 0.0
    %602 = vmatprep.subr.mxu0 0.0
    %603 = vmatpush1.msra.mxu0 0.0
    %604 = vmatprep.subr.mxu0 0.0
    %605 = vmatpush1.msra.mxu0 0.0
    %606 = vmatprep.subr.mxu0 0.0
    %607 = vmatpush1.msra.mxu0 0.0
    %608 = vmatprep.subr.mxu0 0.0
    %609 = vmatpush1.msra.mxu0 0.0
    %610 = vmatprep.subr.mxu0 0.0
    %611 = vmatpush1.msra.mxu0 0.0
    %612 = vmatprep.subr.mxu0 0.0
    %613 = vmatpush1.msra.mxu0 0.0
    %614 = vmatprep.subr.mxu0 0.0
    %615 = vmatpush1.msra.mxu0 0.0
    %616 = vmatprep.subr.mxu0 0.0
    %617 = vmatpush1.msra.mxu0 0.0
    %618 = vmatprep.subr.mxu0 0.0
    %619 = vmatpush1.msra.mxu0 0.0
    %620 = vmatprep.subr.mxu0 0.0
    %621 = vmatpush1.msra.mxu0 0.0
    %622 = vmatprep.subr.mxu0 0.0
    %623 = vmatpush1.msra.mxu0 0.0
    %624 = vmatprep.subr.mxu0 0.0
    %625 = vmatpush1.msra.mxu0 0.0
    %626 = vmatprep.subr.mxu0 0.0
    %627 = vmatpush1.msra.mxu0 0.0
    %628 = vmatprep.subr.mxu0 0.0
    %629 = vmatpush1.msra.mxu0 0.0
    %630 = vmatprep.subr.mxu0 0.0
    %631 = vmatpush1.msra.mxu0 0.0
    %632 = vmatprep.subr.mxu0 0.0
    %633 = vmatpush1.msra.mxu0 0.0
    %634 = vmatprep.subr.mxu0 0.0
    %635 = vmatpush1.msra.mxu0 0.0
    %636 = vmatprep.subr.mxu0 0.0
    %637 = vmatpush1.msra.mxu0 0.0
    %638 = vmatprep.subr.mxu0 0.0
    %639 = vmatpush1.msra.mxu0 0.0
    %640 = vmatprep.subr.mxu0 0.0
    %641 = vmatpush1.msra.mxu0 0.0
    %642 = vmatprep.subr.mxu0 0.0
    %643 = vmatpush1.msra.mxu0 0.0
    %644 = vmatprep.subr.mxu0 0.0
    %645 = vmatpush1.msra.mxu0 0.0
    %646 = vmatprep.subr.mxu0 0.0
    %647 = vmatpush1.msra.mxu0 0.0
    %648 = vmatprep.subr.mxu0 0.0
    %649 = vmatpush1.msra.mxu0 0.0
    %650 = vmatprep.subr.mxu0 0.0
    %651 = vmatpush1.msra.mxu0 0.0
    %652 = vmatprep.mubr.f32.mxu0 0.0
    %v653 = vand.u32 %v134, 4294901760
    %654 = vmatmul.mubr.f32.gmra.mrb[0].mxu0 %v653
    %v655 = vpop.f32.mrb[0].mxu0
    %v656 = vadd.f32 %v548, %v655
    %v657 = vpop.f32.mrb[0].mxu0
    %v658 = vadd.f32 %v550, %v657
    %659 = vdwg.mxu0
    %v660 = vand.u32 %v109, 4294901760
    %661 = vmatprep.subr.mxu0 %v660
    %v662 = vand.u32 %v108, 4294901760
    %663 = vmatpush1.msra.mxu0 %v662
    %v664 = vand.u32 %v113, 4294901760
    %665 = vmatprep.subr.mxu0 %v664
    %v666 = vand.u32 %v112, 4294901760
    %667 = vmatpush1.msra.mxu0 %v666
    %v668 = vand.u32 %v117, 4294901760
    %669 = vmatprep.subr.mxu0 %v668
    %v670 = vand.u32 %v116, 4294901760
    %671 = vmatpush1.msra.mxu0 %v670
    %v672 = vand.u32 %v121, 4294901760
    %673 = vmatprep.subr.mxu0 %v672
    %v674 = vand.u32 %v120, 4294901760
    %675 = vmatpush1.msra.mxu0 %v674
    %v676 = vand.u32 %v125, 4294901760
    %677 = vmatprep.subr.mxu0 %v676
    %v678 = vand.u32 %v124, 4294901760
    %679 = vmatpush1.msra.mxu0 %v678
    %v680 = vand.u32 %v141, 4294901760
    %681 = vmatprep.subr.mxu0 %v680
    %v682 = vand.u32 %v138, 4294901760
    %683 = vmatpush1.msra.mxu0 %v682
    %684 = vmatprep.subr.mxu0 0.0
    %685 = vmatpush1.msra.mxu0 0.0
    %686 = vmatprep.subr.mxu0 0.0
    %687 = vmatpush1.msra.mxu0 0.0
    %688 = vmatprep.subr.mxu0 0.0
    %689 = vmatpush1.msra.mxu0 0.0
    %690 = vmatprep.subr.mxu0 0.0
    %691 = vmatpush1.msra.mxu0 0.0
    %692 = vmatprep.subr.mxu0 0.0
    %693 = vmatpush1.msra.mxu0 0.0
    %694 = vmatprep.subr.mxu0 0.0
    %695 = vmatpush1.msra.mxu0 0.0
    %696 = vmatprep.subr.mxu0 0.0
    %697 = vmatpush1.msra.mxu0 0.0
    %698 = vmatprep.subr.mxu0 0.0
    %699 = vmatpush1.msra.mxu0 0.0
    %700 = vmatprep.subr.mxu0 0.0
    %701 = vmatpush1.msra.mxu0 0.0
    %702 = vmatprep.subr.mxu0 0.0
    %703 = vmatpush1.msra.mxu0 0.0
    %704 = vmatprep.subr.mxu0 0.0
    %705 = vmatpush1.msra.mxu0 0.0
    %706 = vmatprep.subr.mxu0 0.0
    %707 = vmatpush1.msra.mxu0 0.0
    %708 = vmatprep.subr.mxu0 0.0
    %709 = vmatpush1.msra.mxu0 0.0
    %710 = vmatprep.subr.mxu0 0.0
    %711 = vmatpush1.msra.mxu0 0.0
    %712 = vmatprep.subr.mxu0 0.0
    %713 = vmatpush1.msra.mxu0 0.0
    %714 = vmatprep.subr.mxu0 0.0
    %715 = vmatpush1.msra.mxu0 0.0
    %716 = vmatprep.subr.mxu0 0.0
    %717 = vmatpush1.msra.mxu0 0.0
    %718 = vmatprep.subr.mxu0 0.0
    %719 = vmatpush1.msra.mxu0 0.0
    %720 = vmatprep.subr.mxu0 0.0
    %721 = vmatpush1.msra.mxu0 0.0
    %722 = vmatprep.subr.mxu0 0.0
    %723 = vmatpush1.msra.mxu0 0.0
    %724 = vmatprep.subr.mxu0 0.0
    %725 = vmatpush1.msra.mxu0 0.0
    %726 = vmatprep.subr.mxu0 0.0
    %727 = vmatpush1.msra.mxu0 0.0
    %728 = vmatprep.subr.mxu0 0.0
    %729 = vmatpush1.msra.mxu0 0.0
    %730 = vmatprep.subr.mxu0 0.0
    %731 = vmatpush1.msra.mxu0 0.0
    %732 = vmatprep.subr.mxu0 0.0
    %733 = vmatpush1.msra.mxu0 0.0
    %734 = vmatprep.subr.mxu0 0.0
    %735 = vmatpush1.msra.mxu0 0.0
    %736 = vmatprep.mubr.f32.mxu0 0.0
    %v737 = vand.u32 %v134, 4294901760
    %738 = vmatmul.mubr.f32.gmra.mrb[0].mxu0 %v737
    %v739 = vpop.f32.mrb[0].mxu0
    %v740 = vadd.f32 %v656, %v739
    %v741 = vpop.f32.mrb[0].mxu0
    %v742 = vadd.f32 %v658, %v741
    %743 = vdwg.mxu0
    %v744 = vand.u32 %v111, 4294901760
    %745 = vmatprep.subr.mxu0 %v744
    %v746 = vand.u32 %v110, 4294901760
    %747 = vmatpush1.msra.mxu0 %v746
    %v748 = vand.u32 %v115, 4294901760
    %749 = vmatprep.subr.mxu0 %v748
    %v750 = vand.u32 %v114, 4294901760
    %751 = vmatpush1.msra.mxu0 %v750
    %v752 = vand.u32 %v119, 4294901760
    %753 = vmatprep.subr.mxu0 %v752
    %v754 = vand.u32 %v118, 4294901760
    %755 = vmatpush1.msra.mxu0 %v754
    %v756 = vand.u32 %v123, 4294901760
    %757 = vmatprep.subr.mxu0 %v756
    %v758 = vand.u32 %v122, 4294901760
    %759 = vmatpush1.msra.mxu0 %v758
    %v760 = vand.u32 %v127, 4294901760
    %761 = vmatprep.subr.mxu0 %v760
    %v762 = vand.u32 %v126, 4294901760
    %763 = vmatpush1.msra.mxu0 %v762
    %v764 = vand.u32 %v147, 4294901760
    %765 = vmatprep.subr.mxu0 %v764
    %v766 = vand.u32 %v144, 4294901760
    %767 = vmatpush1.msra.mxu0 %v766
    %768 = vmatprep.subr.mxu0 0.0
    %769 = vmatpush1.msra.mxu0 0.0
    %770 = vmatprep.subr.mxu0 0.0
    %771 = vmatpush1.msra.mxu0 0.0
    %772 = vmatprep.subr.mxu0 0.0
    %773 = vmatpush1.msra.mxu0 0.0
    %774 = vmatprep.subr.mxu0 0.0
    %775 = vmatpush1.msra.mxu0 0.0
    %776 = vmatprep.subr.mxu0 0.0
    %777 = vmatpush1.msra.mxu0 0.0
    %778 = vmatprep.subr.mxu0 0.0
    %779 = vmatpush1.msra.mxu0 0.0
    %780 = vmatprep.subr.mxu0 0.0
    %781 = vmatpush1.msra.mxu0 0.0
    %782 = vmatprep.subr.mxu0 0.0
    %783 = vmatpush1.msra.mxu0 0.0
    %784 = vmatprep.subr.mxu0 0.0
    %785 = vmatpush1.msra.mxu0 0.0
    %786 = vmatprep.subr.mxu0 0.0
    %787 = vmatpush1.msra.mxu0 0.0
    %788 = vmatprep.subr.mxu0 0.0
    %789 = vmatpush1.msra.mxu0 0.0
    %790 = vmatprep.subr.mxu0 0.0
    %791 = vmatpush1.msra.mxu0 0.0
    %792 = vmatprep.subr.mxu0 0.0
    %793 = vmatpush1.msra.mxu0 0.0
    %794 = vmatprep.subr.mxu0 0.0
    %795 = vmatpush1.msra.mxu0 0.0
    %796 = vmatprep.subr.mxu0 0.0
    %797 = vmatpush1.msra.mxu0 0.0
    %798 = vmatprep.subr.mxu0 0.0
    %799 = vmatpush1.msra.mxu0 0.0
    %800 = vmatprep.subr.mxu0 0.0
    %801 = vmatpush1.msra.mxu0 0.0
    %802 = vmatprep.subr.mxu0 0.0
    %803 = vmatpush1.msra.mxu0 0.0
    %804 = vmatprep.subr.mxu0 0.0
    %805 = vmatpush1.msra.mxu0 0.0
    %806 = vmatprep.subr.mxu0 0.0
    %807 = vmatpush1.msra.mxu0 0.0
    %808 = vmatprep.subr.mxu0 0.0
    %809 = vmatpush1.msra.mxu0 0.0
    %810 = vmatprep.subr.mxu0 0.0
    %811 = vmatpush1.msra.mxu0 0.0
    %812 = vmatprep.subr.mxu0 0.0
    %813 = vmatpush1.msra.mxu0 0.0
    %814 = vmatprep.subr.mxu0 0.0
    %815 = vmatpush1.msra.mxu0 0.0
    %816 = vmatprep.subr.mxu0 0.0
    %817 = vmatpush1.msra.mxu0 0.0
    %818 = vmatprep.subr.mxu0 0.0
    %819 = vmatpush1.msra.mxu0 0.0
    %820 = vmatprep.mubr.f32.mxu0 0.0
    %v821 = vand.u32 %v134, 4294901760
    %v822 = vsub.f32 %v134, %v821
    %v823 = vand.u32 %v822, 4294901760
    %v824 = vsub.f32 %v822, %v823
    %v825 = vand.u32 %v824, 4294901760
    %826 = vmatmul.mubr.f32.gmra.mrb[0].mxu0 %v825
    %v827 = vpop.f32.mrb[0].mxu0
    %v828 = vadd.f32 0.0, %v827
    %v829 = vpop.f32.mrb[0].mxu0
    %v830 = vadd.f32 0.0, %v829
    %831 = vdwg.mxu0
    %v832 = vand.u32 %v111, 4294901760
    %v833 = vsub.f32 %v111, %v832
    %v834 = vand.u32 %v833, 4294901760
    %v835 = vsub.f32 %v833, %v834
    %v836 = vand.u32 %v835, 4294901760
    %837 = vmatprep.subr.mxu0 %v836
    %v838 = vand.u32 %v110, 4294901760
    %v839 = vsub.f32 %v110, %v838
    %v840 = vand.u32 %v839, 4294901760
    %v841 = vsub.f32 %v839, %v840
    %v842 = vand.u32 %v841, 4294901760
    %843 = vmatpush1.msra.mxu0 %v842
    %v844 = vand.u32 %v115, 4294901760
    %v845 = vsub.f32 %v115, %v844
    %v846 = vand.u32 %v845, 4294901760
    %v847 = vsub.f32 %v845, %v846
    %v848 = vand.u32 %v847, 4294901760
    %849 = vmatprep.subr.mxu0 %v848
    %v850 = vand.u32 %v114, 4294901760
    %v851 = vsub.f32 %v114, %v850
    %v852 = vand.u32 %v851, 4294901760
    %v853 = vsub.f32 %v851, %v852
    %v854 = vand.u32 %v853, 4294901760
    %855 = vmatpush1.msra.mxu0 %v854
    %v856 = vand.u32 %v119, 4294901760
    %v857 = vsub.f32 %v119, %v856
    %v858 = vand.u32 %v857, 4294901760
    %v859 = vsub.f32 %v857, %v858
    %v860 = vand.u32 %v859, 4294901760
    %861 = vmatprep.subr.mxu0 %v860
    %v862 = vand.u32 %v118, 4294901760
    %v863 = vsub.f32 %v118, %v862
    %v864 = vand.u32 %v863, 4294901760
    %v865 = vsub.f32 %v863, %v864
    %v866 = vand.u32 %v865, 4294901760
    %867 = vmatpush1.msra.mxu0 %v866
    %v868 = vand.u32 %v123, 4294901760
    %v869 = vsub.f32 %v123, %v868
    %v870 = vand.u32 %v869, 4294901760
    %v871 = vsub.f32 %v869, %v870
    %v872 = vand.u32 %v871, 4294901760
    %873 = vmatprep.subr.mxu0 %v872
    %v874 = vand.u32 %v122, 4294901760
    %v875 = vsub.f32 %v122, %v874
    %v876 = vand.u32 %v875, 4294901760
    %v877 = vsub.f32 %v875, %v876
    %v878 = vand.u32 %v877, 4294901760
    %879 = vmatpush1.msra.mxu0 %v878
    %v880 = vand.u32 %v127, 4294901760
    %v881 = vsub.f32 %v127, %v880
    %v882 = vand.u32 %v881, 4294901760
    %v883 = vsub.f32 %v881, %v882
    %v884 = vand.u32 %v883, 4294901760
    %885 = vmatprep.subr.mxu0 %v884
    %v886 = vand.u32 %v126, 4294901760
    %v887 = vsub.f32 %v126, %v886
    %v888 = vand.u32 %v887, 4294901760
    %v889 = vsub.f32 %v887, %v888
    %v890 = vand.u32 %v889, 4294901760
    %891 = vmatpush1.msra.mxu0 %v890
    %v892 = vand.u32 %v147, 4294901760
    %v893 = vsub.f32 %v147, %v892
    %v894 = vand.u32 %v893, 4294901760
    %v895 = vsub.f32 %v893, %v894
    %v896 = vand.u32 %v895, 4294901760
    %897 = vmatprep.subr.mxu0 %v896
    %v898 = vand.u32 %v144, 4294901760
    %v899 = vsub.f32 %v144, %v898
    %v900 = vand.u32 %v899, 4294901760
    %v901 = vsub.f32 %v899, %v900
    %v902 = vand.u32 %v901, 4294901760
    %903 = vmatpush1.msra.mxu0 %v902
    %904 = vmatprep.subr.mxu0 0.0
    %905 = vmatpush1.msra.mxu0 0.0
    %906 = vmatprep.subr.mxu0 0.0
    %907 = vmatpush1.msra.mxu0 0.0
    %908 = vmatprep.subr.mxu0 0.0
    %909 = vmatpush1.msra.mxu0 0.0
    %910 = vmatprep.subr.mxu0 0.0
    %911 = vmatpush1.msra.mxu0 0.0
    %912 = vmatprep.subr.mxu0 0.0
    %913 = vmatpush1.msra.mxu0 0.0
    %914 = vmatprep.subr.mxu0 0.0
    %915 = vmatpush1.msra.mxu0 0.0
    %916 = vmatprep.subr.mxu0 0.0
    %917 = vmatpush1.msra.mxu0 0.0
    %918 = vmatprep.subr.mxu0 0.0
    %919 = vmatpush1.msra.mxu0 0.0
    %920 = vmatprep.subr.mxu0 0.0
    %921 = vmatpush1.msra.mxu0 0.0
    %922 = vmatprep.subr.mxu0 0.0
    %923 = vmatpush1.msra.mxu0 0.0
    %924 = vmatprep.subr.mxu0 0.0
    %925 = vmatpush1.msra.mxu0 0.0
    %926 = vmatprep.subr.mxu0 0.0
    %927 = vmatpush1.msra.mxu0 0.0
    %928 = vmatprep.subr.mxu0 0.0
    %929 = vmatpush1.msra.mxu0 0.0
    %930 = vmatprep.subr.mxu0 0.0
    %931 = vmatpush1.msra.mxu0 0.0
    %932 = vmatprep.subr.mxu0 0.0
    %933 = vmatpush1.msra.mxu0 0.0
    %934 = vmatprep.subr.mxu0 0.0
    %935 = vmatpush1.msra.mxu0 0.0
    %936 = vmatprep.subr.mxu0 0.0
    %937 = vmatpush1.msra.mxu0 0.0
    %938 = vmatprep.subr.mxu0 0.0
    %939 = vmatpush1.msra.mxu0 0.0
    %940 = vmatprep.subr.mxu0 0.0
    %941 = vmatpush1.msra.mxu0 0.0
    %942 = vmatprep.subr.mxu0 0.0
    %943 = vmatpush1.msra.mxu0 0.0
    %944 = vmatprep.subr.mxu0 0.0
    %945 = vmatpush1.msra.mxu0 0.0
    %946 = vmatprep.subr.mxu0 0.0
    %947 = vmatpush1.msra.mxu0 0.0
    %948 = vmatprep.subr.mxu0 0.0
    %949 = vmatpush1.msra.mxu0 0.0
    %950 = vmatprep.subr.mxu0 0.0
    %951 = vmatpush1.msra.mxu0 0.0
    %952 = vmatprep.subr.mxu0 0.0
    %953 = vmatpush1.msra.mxu0 0.0
    %954 = vmatprep.subr.mxu0 0.0
    %955 = vmatpush1.msra.mxu0 0.0
    %956 = vmatprep.mubr.f32.mxu0 0.0
    %v957 = vand.u32 %v134, 4294901760
    %958 = vmatmul.mubr.f32.gmra.mrb[0].mxu0 %v957
    %v959 = vpop.f32.mrb[0].mxu0
    %v960 = vadd.f32 %v828, %v959
    %v961 = vpop.f32.mrb[0].mxu0
    %v962 = vadd.f32 %v830, %v961
    %963 = vdwg.mxu0
    %v964 = vand.u32 %v111, 4294901760
    %v965 = vsub.f32 %v111, %v964
    %966 = vmatprep.subr.mxu0 %v965
    %v967 = vand.u32 %v110, 4294901760
    %v968 = vsub.f32 %v110, %v967
    %969 = vmatpush1.msra.mxu0 %v968
    %v970 = vand.u32 %v115, 4294901760
    %v971 = vsub.f32 %v115, %v970
    %972 = vmatprep.subr.mxu0 %v971
    %v973 = vand.u32 %v114, 4294901760
    %v974 = vsub.f32 %v114, %v973
    %975 = vmatpush1.msra.mxu0 %v974
    %v976 = vand.u32 %v119, 4294901760
    %v977 = vsub.f32 %v119, %v976
    %978 = vmatprep.subr.mxu0 %v977
    %v979 = vand.u32 %v118, 4294901760
    %v980 = vsub.f32 %v118, %v979
    %981 = vmatpush1.msra.mxu0 %v980
    %v982 = vand.u32 %v123, 4294901760
    %v983 = vsub.f32 %v123, %v982
    %984 = vmatprep.subr.mxu0 %v983
    %v985 = vand.u32 %v122, 4294901760
    %v986 = vsub.f32 %v122, %v985
    %987 = vmatpush1.msra.mxu0 %v986
    %v988 = vand.u32 %v127, 4294901760
    %v989 = vsub.f32 %v127, %v988
    %990 = vmatprep.subr.mxu0 %v989
    %v991 = vand.u32 %v126, 4294901760
    %v992 = vsub.f32 %v126, %v991
    %993 = vmatpush1.msra.mxu0 %v992
    %v994 = vand.u32 %v147, 4294901760
    %v995 = vsub.f32 %v147, %v994
    %996 = vmatprep.subr.mxu0 %v995
    %v997 = vand.u32 %v144, 4294901760
    %v998 = vsub.f32 %v144, %v997
    %999 = vmatpush1.msra.mxu0 %v998
    %1000 = vmatprep.subr.mxu0 0.0
    %1001 = vmatpush1.msra.mxu0 0.0
    %1002 = vmatprep.subr.mxu0 0.0
    %1003 = vmatpush1.msra.mxu0 0.0
    %1004 = vmatprep.subr.mxu0 0.0
    %1005 = vmatpush1.msra.mxu0 0.0
    %1006 = vmatprep.subr.mxu0 0.0
    %1007 = vmatpush1.msra.mxu0 0.0
    %1008 = vmatprep.subr.mxu0 0.0
    %1009 = vmatpush1.msra.mxu0 0.0
    %1010 = vmatprep.subr.mxu0 0.0
    %1011 = vmatpush1.msra.mxu0 0.0
    %1012 = vmatprep.subr.mxu0 0.0
    %1013 = vmatpush1.msra.mxu0 0.0
    %1014 = vmatprep.subr.mxu0 0.0
    %1015 = vmatpush1.msra.mxu0 0.0
    %1016 = vmatprep.subr.mxu0 0.0
    %1017 = vmatpush1.msra.mxu0 0.0
    %1018 = vmatprep.subr.mxu0 0.0
    %1019 = vmatpush1.msra.mxu0 0.0
    %1020 = vmatprep.subr.mxu0 0.0
    %1021 = vmatpush1.msra.mxu0 0.0
    %1022 = vmatprep.subr.mxu0 0.0
    %1023 = vmatpush1.msra.mxu0 0.0
    %1024 = vmatprep.subr.mxu0 0.0
    %1025 = vmatpush1.msra.mxu0 0.0
    %1026 = vmatprep.subr.mxu0 0.0
    %1027 = vmatpush1.msra.mxu0 0.0
    %1028 = vmatprep.subr.mxu0 0.0
    %1029 = vmatpush1.msra.mxu0 0.0
    %1030 = vmatprep.subr.mxu0 0.0
    %1031 = vmatpush1.msra.mxu0 0.0
    %1032 = vmatprep.subr.mxu0 0.0
    %1033 = vmatpush1.msra.mxu0 0.0
    %1034 = vmatprep.subr.mxu0 0.0
    %1035 = vmatpush1.msra.mxu0 0.0
    %1036 = vmatprep.subr.mxu0 0.0
    %1037 = vmatpush1.msra.mxu0 0.0
    %1038 = vmatprep.subr.mxu0 0.0
    %1039 = vmatpush1.msra.mxu0 0.0
    %1040 = vmatprep.subr.mxu0 0.0
    %1041 = vmatpush1.msra.mxu0 0.0
    %1042 = vmatprep.subr.mxu0 0.0
    %1043 = vmatpush1.msra.mxu0 0.0
    %1044 = vmatprep.subr.mxu0 0.0
    %1045 = vmatpush1.msra.mxu0 0.0
    %1046 = vmatprep.subr.mxu0 0.0
    %1047 = vmatpush1.msra.mxu0 0.0
    %1048 = vmatprep.subr.mxu0 0.0
    %1049 = vmatpush1.msra.mxu0 0.0
    %1050 = vmatprep.subr.mxu0 0.0
    %1051 = vmatpush1.msra.mxu0 0.0
    %1052 = vmatprep.mubr.f32.mxu0 0.0
    %v1053 = vand.u32 %v134, 4294901760
    %v1054 = vsub.f32 %v134, %v1053
    %1055 = vmatmul.mubr.f32.gmra.mrb[0].mxu0 %v1054
    %v1056 = vpop.f32.mrb[0].mxu0
    %v1057 = vadd.f32 %v960, %v1056
    %v1058 = vpop.f32.mrb[0].mxu0
    %v1059 = vadd.f32 %v962, %v1058
    %1060 = vdwg.mxu0
    %v1061 = vand.u32 %v111, 4294901760
    %1062 = vmatprep.subr.mxu0 %v1061
    %v1063 = vand.u32 %v110, 4294901760
    %1064 = vmatpush1.msra.mxu0 %v1063
    %v1065 = vand.u32 %v115, 4294901760
    %1066 = vmatprep.subr.mxu0 %v1065
    %v1067 = vand.u32 %v114, 4294901760
    %1068 = vmatpush1.msra.mxu0 %v1067
    %v1069 = vand.u32 %v119, 4294901760
    %1070 = vmatprep.subr.mxu0 %v1069
    %v1071 = vand.u32 %v118, 4294901760
    %1072 = vmatpush1.msra.mxu0 %v1071
    %v1073 = vand.u32 %v123, 4294901760
    %1074 = vmatprep.subr.mxu0 %v1073
    %v1075 = vand.u32 %v122, 4294901760
    %1076 = vmatpush1.msra.mxu0 %v1075
    %v1077 = vand.u32 %v127, 4294901760
    %1078 = vmatprep.subr.mxu0 %v1077
    %v1079 = vand.u32 %v126, 4294901760
    %1080 = vmatpush1.msra.mxu0 %v1079
    %v1081 = vand.u32 %v147, 4294901760
    %1082 = vmatprep.subr.mxu0 %v1081
    %v1083 = vand.u32 %v144, 4294901760
    %1084 = vmatpush1.msra.mxu0 %v1083
    %1085 = vmatprep.subr.mxu0 0.0
    %1086 = vmatpush1.msra.mxu0 0.0
    %1087 = vmatprep.subr.mxu0 0.0
    %1088 = vmatpush1.msra.mxu0 0.0
    %1089 = vmatprep.subr.mxu0 0.0
    %1090 = vmatpush1.msra.mxu0 0.0
    %1091 = vmatprep.subr.mxu0 0.0
    %1092 = vmatpush1.msra.mxu0 0.0
    %1093 = vmatprep.subr.mxu0 0.0
    %1094 = vmatpush1.msra.mxu0 0.0
    %1095 = vmatprep.subr.mxu0 0.0
    %1096 = vmatpush1.msra.mxu0 0.0
    %1097 = vmatprep.subr.mxu0 0.0
    %1098 = vmatpush1.msra.mxu0 0.0
    %1099 = vmatprep.subr.mxu0 0.0
    %1100 = vmatpush1.msra.mxu0 0.0
    %1101 = vmatprep.subr.mxu0 0.0
    %1102 = vmatpush1.msra.mxu0 0.0
    %1103 = vmatprep.subr.mxu0 0.0
    %1104 = vmatpush1.msra.mxu0 0.0
    %1105 = vmatprep.subr.mxu0 0.0
    %1106 = vmatpush1.msra.mxu0 0.0
    %1107 = vmatprep.subr.mxu0 0.0
    %1108 = vmatpush1.msra.mxu0 0.0
    %1109 = vmatprep.subr.mxu0 0.0
    %1110 = vmatpush1.msra.mxu0 0.0
    %1111 = vmatprep.subr.mxu0 0.0
    %1112 = vmatpush1.msra.mxu0 0.0
    %1113 = vmatprep.subr.mxu0 0.0
    %1114 = vmatpush1.msra.mxu0 0.0
    %1115 = vmatprep.subr.mxu0 0.0
    %1116 = vmatpush1.msra.mxu0 0.0
    %1117 = vmatprep.subr.mxu0 0.0
    %1118 = vmatpush1.msra.mxu0 0.0
    %1119 = vmatprep.subr.mxu0 0.0
    %1120 = vmatpush1.msra.mxu0 0.0
    %1121 = vmatprep.subr.mxu0 0.0
    %1122 = vmatpush1.msra.mxu0 0.0
    %1123 = vmatprep.subr.mxu0 0.0
    %1124 = vmatpush1.msra.mxu0 0.0
    %1125 = vmatprep.subr.mxu0 0.0
    %1126 = vmatpush1.msra.mxu0 0.0
    %1127 = vmatprep.subr.mxu0 0.0
    %1128 = vmatpush1.msra.mxu0 0.0
    %1129 = vmatprep.subr.mxu0 0.0
    %1130 = vmatpush1.msra.mxu0 0.0
    %1131 = vmatprep.subr.mxu0 0.0
    %1132 = vmatpush1.msra.mxu0 0.0
    %1133 = vmatprep.subr.mxu0 0.0
    %1134 = vmatpush1.msra.mxu0 0.0
    %1135 = vmatprep.subr.mxu0 0.0
    %1136 = vmatpush1.msra.mxu0 0.0
    %1137 = vmatprep.mubr.f32.mxu0 0.0
    %v1138 = vand.u32 %v134, 4294901760
    %v1139 = vsub.f32 %v134, %v1138
    %v1140 = vand.u32 %v1139, 4294901760
    %1141 = vmatmul.mubr.f32.gmra.mrb[0].mxu0 %v1140
    %v1142 = vpop.f32.mrb[0].mxu0
    %v1143 = vadd.f32 %v1057, %v1142
    %v1144 = vpop.f32.mrb[0].mxu0
    %v1145 = vadd.f32 %v1059, %v1144
    %1146 = vdwg.mxu0
    %v1147 = vand.u32 %v111, 4294901760
    %v1148 = vsub.f32 %v111, %v1147
    %v1149 = vand.u32 %v1148, 4294901760
    %1150 = vmatprep.subr.mxu0 %v1149
    %v1151 = vand.u32 %v110, 4294901760
    %v1152 = vsub.f32 %v110, %v1151
    %v1153 = vand.u32 %v1152, 4294901760
    %1154 = vmatpush1.msra.mxu0 %v1153
    %v1155 = vand.u32 %v115, 4294901760
    %v1156 = vsub.f32 %v115, %v1155
    %v1157 = vand.u32 %v1156, 4294901760
    %1158 = vmatprep.subr.mxu0 %v1157
    %v1159 = vand.u32 %v114, 4294901760
    %v1160 = vsub.f32 %v114, %v1159
    %v1161 = vand.u32 %v1160, 4294901760
    %1162 = vmatpush1.msra.mxu0 %v1161
    %v1163 = vand.u32 %v119, 4294901760
    %v1164 = vsub.f32 %v119, %v1163
    %v1165 = vand.u32 %v1164, 4294901760
    %1166 = vmatprep.subr.mxu0 %v1165
    %v1167 = vand.u32 %v118, 4294901760
    %v1168 = vsub.f32 %v118, %v1167
    %v1169 = vand.u32 %v1168, 4294901760
    %1170 = vmatpush1.msra.mxu0 %v1169
    %v1171 = vand.u32 %v123, 4294901760
    %v1172 = vsub.f32 %v123, %v1171
    %v1173 = vand.u32 %v1172, 4294901760
    %1174 = vmatprep.subr.mxu0 %v1173
    %v1175 = vand.u32 %v122, 4294901760
    %v1176 = vsub.f32 %v122, %v1175
    %v1177 = vand.u32 %v1176, 4294901760
    %1178 = vmatpush1.msra.mxu0 %v1177
    %v1179 = vand.u32 %v127, 4294901760
    %v1180 = vsub.f32 %v127, %v1179
    %v1181 = vand.u32 %v1180, 4294901760
    %1182 = vmatprep.subr.mxu0 %v1181
    %v1183 = vand.u32 %v126, 4294901760
    %v1184 = vsub.f32 %v126, %v1183
    %v1185 = vand.u32 %v1184, 4294901760
    %1186 = vmatpush1.msra.mxu0 %v1185
    %v1187 = vand.u32 %v147, 4294901760
    %v1188 = vsub.f32 %v147, %v1187
    %v1189 = vand.u32 %v1188, 4294901760
    %1190 = vmatprep.subr.mxu0 %v1189
    %v1191 = vand.u32 %v144, 4294901760
    %v1192 = vsub.f32 %v144, %v1191
    %v1193 = vand.u32 %v1192, 4294901760
    %1194 = vmatpush1.msra.mxu0 %v1193
    %1195 = vmatprep.subr.mxu0 0.0
    %1196 = vmatpush1.msra.mxu0 0.0
    %1197 = vmatprep.subr.mxu0 0.0
    %1198 = vmatpush1.msra.mxu0 0.0
    %1199 = vmatprep.subr.mxu0 0.0
    %1200 = vmatpush1.msra.mxu0 0.0
    %1201 = vmatprep.subr.mxu0 0.0
    %1202 = vmatpush1.msra.mxu0 0.0
    %1203 = vmatprep.subr.mxu0 0.0
    %1204 = vmatpush1.msra.mxu0 0.0
    %1205 = vmatprep.subr.mxu0 0.0
    %1206 = vmatpush1.msra.mxu0 0.0
    %1207 = vmatprep.subr.mxu0 0.0
    %1208 = vmatpush1.msra.mxu0 0.0
    %1209 = vmatprep.subr.mxu0 0.0
    %1210 = vmatpush1.msra.mxu0 0.0
    %1211 = vmatprep.subr.mxu0 0.0
    %1212 = vmatpush1.msra.mxu0 0.0
    %1213 = vmatprep.subr.mxu0 0.0
    %1214 = vmatpush1.msra.mxu0 0.0
    %1215 = vmatprep.subr.mxu0 0.0
    %1216 = vmatpush1.msra.mxu0 0.0
    %1217 = vmatprep.subr.mxu0 0.0
    %1218 = vmatpush1.msra.mxu0 0.0
    %1219 = vmatprep.subr.mxu0 0.0
    %1220 = vmatpush1.msra.mxu0 0.0
    %1221 = vmatprep.subr.mxu0 0.0
    %1222 = vmatpush1.msra.mxu0 0.0
    %1223 = vmatprep.subr.mxu0 0.0
    %1224 = vmatpush1.msra.mxu0 0.0
    %1225 = vmatprep.subr.mxu0 0.0
    %1226 = vmatpush1.msra.mxu0 0.0
    %1227 = vmatprep.subr.mxu0 0.0
    %1228 = vmatpush1.msra.mxu0 0.0
    %1229 = vmatprep.subr.mxu0 0.0
    %1230 = vmatpush1.msra.mxu0 0.0
    %1231 = vmatprep.subr.mxu0 0.0
    %1232 = vmatpush1.msra.mxu0 0.0
    %1233 = vmatprep.subr.mxu0 0.0
    %1234 = vmatpush1.msra.mxu0 0.0
    %1235 = vmatprep.subr.mxu0 0.0
    %1236 = vmatpush1.msra.mxu0 0.0
    %1237 = vmatprep.subr.mxu0 0.0
    %1238 = vmatpush1.msra.mxu0 0.0
    %1239 = vmatprep.subr.mxu0 0.0
    %1240 = vmatpush1.msra.mxu0 0.0
    %1241 = vmatprep.subr.mxu0 0.0
    %1242 = vmatpush1.msra.mxu0 0.0
    %1243 = vmatprep.subr.mxu0 0.0
    %1244 = vmatpush1.msra.mxu0 0.0
    %1245 = vmatprep.subr.mxu0 0.0
    %1246 = vmatpush1.msra.mxu0 0.0
    %1247 = vmatprep.mubr.f32.mxu0 0.0
    %v1248 = vand.u32 %v134, 4294901760
    %1249 = vmatmul.mubr.f32.gmra.mrb[0].mxu0 %v1248
    %v1250 = vpop.f32.mrb[0].mxu0
    %v1251 = vadd.f32 %v1143, %v1250
    %v1252 = vpop.f32.mrb[0].mxu0
    %v1253 = vadd.f32 %v1145, %v1252
    %1254 = vdwg.mxu0
    %v1255 = vand.u32 %v111, 4294901760
    %1256 = vmatprep.subr.mxu0 %v1255
    %v1257 = vand.u32 %v110, 4294901760
    %1258 = vmatpush1.msra.mxu0 %v1257
    %v1259 = vand.u32 %v115, 4294901760
    %1260 = vmatprep.subr.mxu0 %v1259
    %v1261 = vand.u32 %v114, 4294901760
    %1262 = vmatpush1.msra.mxu0 %v1261
    %v1263 = vand.u32 %v119, 4294901760
    %1264 = vmatprep.subr.mxu0 %v1263
    %v1265 = vand.u32 %v118, 4294901760
    %1266 = vmatpush1.msra.mxu0 %v1265
    %v1267 = vand.u32 %v123, 4294901760
    %1268 = vmatprep.subr.mxu0 %v1267
    %v1269 = vand.u32 %v122, 4294901760
    %1270 = vmatpush1.msra.mxu0 %v1269
    %v1271 = vand.u32 %v127, 4294901760
    %1272 = vmatprep.subr.mxu0 %v1271
    %v1273 = vand.u32 %v126, 4294901760
    %1274 = vmatpush1.msra.mxu0 %v1273
    %v1275 = vand.u32 %v147, 4294901760
    %1276 = vmatprep.subr.mxu0 %v1275
    %v1277 = vand.u32 %v144, 4294901760
    %1278 = vmatpush1.msra.mxu0 %v1277
    %1279 = vmatprep.subr.mxu0 0.0
    %1280 = vmatpush1.msra.mxu0 0.0
    %1281 = vmatprep.subr.mxu0 0.0
    %1282 = vmatpush1.msra.mxu0 0.0
    %1283 = vmatprep.subr.mxu0 0.0
    %1284 = vmatpush1.msra.mxu0 0.0
    %1285 = vmatprep.subr.mxu0 0.0
    %1286 = vmatpush1.msra.mxu0 0.0
    %1287 = vmatprep.subr.mxu0 0.0
    %1288 = vmatpush1.msra.mxu0 0.0
    %1289 = vmatprep.subr.mxu0 0.0
    %1290 = vmatpush1.msra.mxu0 0.0
    %1291 = vmatprep.subr.mxu0 0.0
    %1292 = vmatpush1.msra.mxu0 0.0
    %1293 = vmatprep.subr.mxu0 0.0
    %1294 = vmatpush1.msra.mxu0 0.0
    %1295 = vmatprep.subr.mxu0 0.0
    %1296 = vmatpush1.msra.mxu0 0.0
    %1297 = vmatprep.subr.mxu0 0.0
    %1298 = vmatpush1.msra.mxu0 0.0
    %1299 = vmatprep.subr.mxu0 0.0
    %1300 = vmatpush1.msra.mxu0 0.0
    %1301 = vmatprep.subr.mxu0 0.0
    %1302 = vmatpush1.msra.mxu0 0.0
    %1303 = vmatprep.subr.mxu0 0.0
    %1304 = vmatpush1.msra.mxu0 0.0
    %1305 = vmatprep.subr.mxu0 0.0
    %1306 = vmatpush1.msra.mxu0 0.0
    %1307 = vmatprep.subr.mxu0 0.0
    %1308 = vmatpush1.msra.mxu0 0.0
    %1309 = vmatprep.subr.mxu0 0.0
    %1310 = vmatpush1.msra.mxu0 0.0
    %1311 = vmatprep.subr.mxu0 0.0
    %1312 = vmatpush1.msra.mxu0 0.0
    %1313 = vmatprep.subr.mxu0 0.0
    %1314 = vmatpush1.msra.mxu0 0.0
    %1315 = vmatprep.subr.mxu0 0.0
    %1316 = vmatpush1.msra.mxu0 0.0
    %1317 = vmatprep.subr.mxu0 0.0
    %1318 = vmatpush1.msra.mxu0 0.0
    %1319 = vmatprep.subr.mxu0 0.0
    %1320 = vmatpush1.msra.mxu0 0.0
    %1321 = vmatprep.subr.mxu0 0.0
    %1322 = vmatpush1.msra.mxu0 0.0
    %1323 = vmatprep.subr.mxu0 0.0
    %1324 = vmatpush1.msra.mxu0 0.0
    %1325 = vmatprep.subr.mxu0 0.0
    %1326 = vmatpush1.msra.mxu0 0.0
    %1327 = vmatprep.subr.mxu0 0.0
    %1328 = vmatpush1.msra.mxu0 0.0
    %1329 = vmatprep.subr.mxu0 0.0
    %1330 = vmatpush1.msra.mxu0 0.0
    %1331 = vmatprep.mubr.f32.mxu0 0.0
    %v1332 = vand.u32 %v134, 4294901760
    %1333 = vmatmul.mubr.f32.gmra.mrb[0].mxu0 %v1332
    %v1334 = vpop.f32.mrb[0].mxu0
    %v1335 = vadd.f32 %v1251, %v1334
    %v1336 = vpop.f32.mrb[0].mxu0
    %v1337 = vadd.f32 %v1253, %v1336
    %1338 = vdwg.mxu0
    %1339 = vst [vmem:[#allocation6] sm:$0x1f] %v740
    %1340 = vst [vmem:[#allocation6 + $0x8] sm:$0x1f] %v742
    %1341 = vst [vmem:[#allocation6 + $0x10] sm:$0x1f] %v1335
    %1342 = vst [vmem:[#allocation6 + $0x18] sm:$0x1f] %v1337
    %s1343 = scalar_lea.vmem [#allocation2], 1
    %v1344 = vld [vmem:[%s1343] ss:$2 sm:$0xf]
    %v1345 = vlaneseq
    %v1346 = vshrl.u32 %v1345, 7
    %v1347 = vsub.s32 0, %v1346
    %v1348 = vrot.slane %v1344, %v1347
    %v1349 = vlaneseq
    %v1350 = vshrl.u32 %v1349, 7
    %v1351 = vsub.s32 1, %v1350
    %v1352 = vrot.slane %v1344, %v1351
    %v1353 = vlaneseq
    %v1354 = vshrl.u32 %v1353, 7
    %v1355 = vsub.s32 2, %v1354
    %v1356 = vrot.slane %v1344, %v1355
    %v1357 = vlaneseq
    %v1358 = vshrl.u32 %v1357, 7
    %v1359 = vsub.s32 3, %v1358
    %v1360 = vrot.slane %v1344, %v1359
    %vm1361 = vcmp.eq.s32.totalorder %v1348, %v37
    %vm1362 = vcmp.eq.s32.totalorder %v1352, %v37
    %vm1363 = vcmp.eq.s32.totalorder %v1356, %v37
    %vm1364 = vcmp.eq.s32.totalorder %v1360, %v37
    %vm1365 = vcmp.eq.s32.totalorder %v1348, %v38
    %vm1366 = vcmp.eq.s32.totalorder %v1352, %v38
    %vm1367 = vcmp.eq.s32.totalorder %v1356, %v38
    %vm1368 = vcmp.eq.s32.totalorder %v1360, %v38
    %vm1369 = vcmp.eq.s32.totalorder %v1348, %v39
    %vm1370 = vcmp.eq.s32.totalorder %v1352, %v39
    %vm1371 = vcmp.eq.s32.totalorder %v1356, %v39
    %vm1372 = vcmp.eq.s32.totalorder %v1360, %v39
    %vm1373 = vcmp.eq.s32.totalorder %v1348, %v40
    %vm1374 = vcmp.eq.s32.totalorder %v1352, %v40
    %vm1375 = vcmp.eq.s32.totalorder %v1356, %v40
    %vm1376 = vcmp.eq.s32.totalorder %v1360, %v40
    %vm1377 = vcmp.eq.s32.totalorder %v1348, %v41
    %vm1378 = vcmp.eq.s32.totalorder %v1352, %v41
    %vm1379 = vcmp.eq.s32.totalorder %v1356, %v41
    %vm1380 = vcmp.eq.s32.totalorder %v1360, %v41
    %vm1381 = vcmp.eq.s32.totalorder %v1348, %v42
    %vm1382 = vcmp.eq.s32.totalorder %v1352, %v42
    %vm1383 = vcmp.eq.s32.totalorder %v1356, %v42
    %vm1384 = vcmp.eq.s32.totalorder %v1360, %v42
    %v1385 = vsel %vm1361, 1, 0
    %v1386 = vsel %vm1362, 1, 0
    %v1387 = vsel %vm1363, 1, 0
    %v1388 = vsel %vm1364, 1, 0
    %v1389 = vsel %vm1365, 1, 0
    %v1390 = vsel %vm1366, 1, 0
    %v1391 = vsel %vm1367, 1, 0
    %v1392 = vsel %vm1368, 1, 0
    %v1393 = vsel %vm1369, 1, 0
    %v1394 = vsel %vm1370, 1, 0
    %v1395 = vsel %vm1371, 1, 0
    %v1396 = vsel %vm1372, 1, 0
    %v1397 = vsel %vm1373, 1, 0
    %v1398 = vsel %vm1374, 1, 0
    %v1399 = vsel %vm1375, 1, 0
    %v1400 = vsel %vm1376, 1, 0
    %v1401 = vsel %vm1377, 1, 0
    %v1402 = vsel %vm1378, 1, 0
    %v1403 = vsel %vm1379, 1, 0
    %v1404 = vsel %vm1380, 1, 0
    %v1405 = vsel %vm1381, 1, 0
    %v1406 = vsel %vm1382, 1, 0
    %v1407 = vsel %vm1383, 1, 0
    %v1408 = vsel %vm1384, 1, 0
    %v1409 = vcvt.s32.f32 %v1385
    %v1410 = vcvt.s32.f32 %v1386
    %v1411 = vcvt.s32.f32 %v1387
    %v1412 = vcvt.s32.f32 %v1388
    %v1413 = vcvt.s32.f32 %v1389
    %v1414 = vcvt.s32.f32 %v1390
    %v1415 = vcvt.s32.f32 %v1391
    %v1416 = vcvt.s32.f32 %v1392
    %v1417 = vcvt.s32.f32 %v1393
    %v1418 = vcvt.s32.f32 %v1394
    %v1419 = vcvt.s32.f32 %v1395
    %v1420 = vcvt.s32.f32 %v1396
    %v1421 = vcvt.s32.f32 %v1397
    %v1422 = vcvt.s32.f32 %v1398
    %v1423 = vcvt.s32.f32 %v1399
    %v1424 = vcvt.s32.f32 %v1400
    %v1425 = vcvt.s32.f32 %v1401
    %v1426 = vcvt.s32.f32 %v1402
    %v1427 = vcvt.s32.f32 %v1403
    %v1428 = vcvt.s32.f32 %v1404
    %v1429 = vcvt.s32.f32 %v1405
    %v1430 = vcvt.s32.f32 %v1406
    %v1431 = vcvt.s32.f32 %v1407
    %v1432 = vcvt.s32.f32 %v1408
    %v1434 = vsel %vm136, %v1429, 0
    %v1437 = vsel %vm136, %v1430, 0
    %v1440 = vsel %vm136, %v1431, 0
    %v1443 = vsel %vm136, %v1432, 0
    %v1445 = vand.u32 %v1410, 4294901760
    %1446 = vmatprep.subr.mxu0 %v1445
    %v1447 = vand.u32 %v1409, 4294901760
    %1448 = vmatpush1.msra.mxu0 %v1447
    %v1449 = vand.u32 %v1414, 4294901760
    %1450 = vmatprep.subr.mxu0 %v1449
    %v1451 = vand.u32 %v1413, 4294901760
    %1452 = vmatpush1.msra.mxu0 %v1451
    %v1453 = vand.u32 %v1418, 4294901760
    %1454 = vmatprep.subr.mxu0 %v1453
    %v1455 = vand.u32 %v1417, 4294901760
    %1456 = vmatpush1.msra.mxu0 %v1455
    %v1457 = vand.u32 %v1422, 4294901760
    %1458 = vmatprep.subr.mxu0 %v1457
    %v1459 = vand.u32 %v1421, 4294901760
    %1460 = vmatpush1.msra.mxu0 %v1459
    %v1461 = vand.u32 %v1426, 4294901760
    %1462 = vmatprep.subr.mxu0 %v1461
    %v1463 = vand.u32 %v1425, 4294901760
    %1464 = vmatpush1.msra.mxu0 %v1463
    %v1465 = vand.u32 %v1437, 4294901760
    %1466 = vmatprep.subr.mxu0 %v1465
    %v1467 = vand.u32 %v1434, 4294901760
    %1468 = vmatpush1.msra.mxu0 %v1467
    %1469 = vmatprep.subr.mxu0 0.0
    %1470 = vmatpush1.msra.mxu0 0.0
    %1471 = vmatprep.subr.mxu0 0.0
    %1472 = vmatpush1.msra.mxu0 0.0
    %1473 = vmatprep.subr.mxu0 0.0
    %1474 = vmatpush1.msra.mxu0 0.0
    %1475 = vmatprep.subr.mxu0 0.0
    %1476 = vmatpush1.msra.mxu0 0.0
    %1477 = vmatprep.subr.mxu0 0.0
    %1478 = vmatpush1.msra.mxu0 0.0
    %1479 = vmatprep.subr.mxu0 0.0
    %1480 = vmatpush1.msra.mxu0 0.0
    %1481 = vmatprep.subr.mxu0 0.0
    %1482 = vmatpush1.msra.mxu0 0.0
    %1483 = vmatprep.subr.mxu0 0.0
    %1484 = vmatpush1.msra.mxu0 0.0
    %1485 = vmatprep.subr.mxu0 0.0
    %1486 = vmatpush1.msra.mxu0 0.0
    %1487 = vmatprep.subr.mxu0 0.0
    %1488 = vmatpush1.msra.mxu0 0.0
    %1489 = vmatprep.subr.mxu0 0.0
    %1490 = vmatpush1.msra.mxu0 0.0
    %1491 = vmatprep.subr.mxu0 0.0
    %1492 = vmatpush1.msra.mxu0 0.0
    %1493 = vmatprep.subr.mxu0 0.0
    %1494 = vmatpush1.msra.mxu0 0.0
    %1495 = vmatprep.subr.mxu0 0.0
    %1496 = vmatpush1.msra.mxu0 0.0
    %1497 = vmatprep.subr.mxu0 0.0
    %1498 = vmatpush1.msra.mxu0 0.0
    %1499 = vmatprep.subr.mxu0 0.0
    %1500 = vmatpush1.msra.mxu0 0.0
    %1501 = vmatprep.subr.mxu0 0.0
    %1502 = vmatpush1.msra.mxu0 0.0
    %1503 = vmatprep.subr.mxu0 0.0
    %1504 = vmatpush1.msra.mxu0 0.0
    %1505 = vmatprep.subr.mxu0 0.0
    %1506 = vmatpush1.msra.mxu0 0.0
    %1507 = vmatprep.subr.mxu0 0.0
    %1508 = vmatpush1.msra.mxu0 0.0
    %1509 = vmatprep.subr.mxu0 0.0
    %1510 = vmatpush1.msra.mxu0 0.0
    %1511 = vmatprep.subr.mxu0 0.0
    %1512 = vmatpush1.msra.mxu0 0.0
    %1513 = vmatprep.subr.mxu0 0.0
    %1514 = vmatpush1.msra.mxu0 0.0
    %1515 = vmatprep.subr.mxu0 0.0
    %1516 = vmatpush1.msra.mxu0 0.0
    %1517 = vmatprep.subr.mxu0 0.0
    %1518 = vmatpush1.msra.mxu0 0.0
    %1519 = vmatprep.subr.mxu0 0.0
    %1520 = vmatpush1.msra.mxu0 0.0
    %1521 = vmatprep.mubr.f32.mxu0 0.0
    %v1522 = vand.u32 %v134, 4294901760
    %v1523 = vsub.f32 %v134, %v1522
    %v1524 = vand.u32 %v1523, 4294901760
    %v1525 = vsub.f32 %v1523, %v1524
    %v1526 = vand.u32 %v1525, 4294901760
    %1527 = vmatmul.mubr.f32.gmra.mrb[0].mxu0 %v1526
    %v1528 = vpop.f32.mrb[0].mxu0
    %v1529 = vadd.f32 0.0, %v1528
    %v1530 = vpop.f32.mrb[0].mxu0
    %v1531 = vadd.f32 0.0, %v1530
    %1532 = vdwg.mxu0
    %v1533 = vand.u32 %v1410, 4294901760
    %v1534 = vsub.f32 %v1410, %v1533
    %v1535 = vand.u32 %v1534, 4294901760
    %v1536 = vsub.f32 %v1534, %v1535
    %v1537 = vand.u32 %v1536, 4294901760
    %1538 = vmatprep.subr.mxu0 %v1537
    %v1539 = vand.u32 %v1409, 4294901760
    %v1540 = vsub.f32 %v1409, %v1539
    %v1541 = vand.u32 %v1540, 4294901760
    %v1542 = vsub.f32 %v1540, %v1541
    %v1543 = vand.u32 %v1542, 4294901760
    %1544 = vmatpush1.msra.mxu0 %v1543
    %v1545 = vand.u32 %v1414, 4294901760
    %v1546 = vsub.f32 %v1414, %v1545
    %v1547 = vand.u32 %v1546, 4294901760
    %v1548 = vsub.f32 %v1546, %v1547
    %v1549 = vand.u32 %v1548, 4294901760
    %1550 = vmatprep.subr.mxu0 %v1549
    %v1551 = vand.u32 %v1413, 4294901760
    %v1552 = vsub.f32 %v1413, %v1551
    %v1553 = vand.u32 %v1552, 4294901760
    %v1554 = vsub.f32 %v1552, %v1553
    %v1555 = vand.u32 %v1554, 4294901760
    %1556 = vmatpush1.msra.mxu0 %v1555
    %v1557 = vand.u32 %v1418, 4294901760
    %v1558 = vsub.f32 %v1418, %v1557
    %v1559 = vand.u32 %v1558, 4294901760
    %v1560 = vsub.f32 %v1558, %v1559
    %v1561 = vand.u32 %v1560, 4294901760
    %1562 = vmatprep.subr.mxu0 %v1561
    %v1563 = vand.u32 %v1417, 4294901760
    %v1564 = vsub.f32 %v1417, %v1563
    %v1565 = vand.u32 %v1564, 4294901760
    %v1566 = vsub.f32 %v1564, %v1565
    %v1567 = vand.u32 %v1566, 4294901760
    %1568 = vmatpush1.msra.mxu0 %v1567
    %v1569 = vand.u32 %v1422, 4294901760
    %v1570 = vsub.f32 %v1422, %v1569
    %v1571 = vand.u32 %v1570, 4294901760
    %v1572 = vsub.f32 %v1570, %v1571
    %v1573 = vand.u32 %v1572, 4294901760
    %1574 = vmatprep.subr.mxu0 %v1573
    %v1575 = vand.u32 %v1421, 4294901760
    %v1576 = vsub.f32 %v1421, %v1575
    %v1577 = vand.u32 %v1576, 4294901760
    %v1578 = vsub.f32 %v1576, %v1577
    %v1579 = vand.u32 %v1578, 4294901760
    %1580 = vmatpush1.msra.mxu0 %v1579
    %v1581 = vand.u32 %v1426, 4294901760
    %v1582 = vsub.f32 %v1426, %v1581
    %v1583 = vand.u32 %v1582, 4294901760
    %v1584 = vsub.f32 %v1582, %v1583
    %v1585 = vand.u32 %v1584, 4294901760
    %1586 = vmatprep.subr.mxu0 %v1585
    %v1587 = vand.u32 %v1425, 4294901760
    %v1588 = vsub.f32 %v1425, %v1587
    %v1589 = vand.u32 %v1588, 4294901760
    %v1590 = vsub.f32 %v1588, %v1589
    %v1591 = vand.u32 %v1590, 4294901760
    %1592 = vmatpush1.msra.mxu0 %v1591
    %v1593 = vand.u32 %v1437, 4294901760
    %v1594 = vsub.f32 %v1437, %v1593
    %v1595 = vand.u32 %v1594, 4294901760
    %v1596 = vsub.f32 %v1594, %v1595
    %v1597 = vand.u32 %v1596, 4294901760
    %1598 = vmatprep.subr.mxu0 %v1597
    %v1599 = vand.u32 %v1434, 4294901760
    %v1600 = vsub.f32 %v1434, %v1599
    %v1601 = vand.u32 %v1600, 4294901760
    %v1602 = vsub.f32 %v1600, %v1601
    %v1603 = vand.u32 %v1602, 4294901760
    %1604 = vmatpush1.msra.mxu0 %v1603
    %1605 = vmatprep.subr.mxu0 0.0
    %1606 = vmatpush1.msra.mxu0 0.0
    %1607 = vmatprep.subr.mxu0 0.0
    %1608 = vmatpush1.msra.mxu0 0.0
    %1609 = vmatprep.subr.mxu0 0.0
    %1610 = vmatpush1.msra.mxu0 0.0
    %1611 = vmatprep.subr.mxu0 0.0
    %1612 = vmatpush1.msra.mxu0 0.0
    %1613 = vmatprep.subr.mxu0 0.0
    %1614 = vmatpush1.msra.mxu0 0.0
    %1615 = vmatprep.subr.mxu0 0.0
    %1616 = vmatpush1.msra.mxu0 0.0
    %1617 = vmatprep.subr.mxu0 0.0
    %1618 = vmatpush1.msra.mxu0 0.0
    %1619 = vmatprep.subr.mxu0 0.0
    %1620 = vmatpush1.msra.mxu0 0.0
    %1621 = vmatprep.subr.mxu0 0.0
    %1622 = vmatpush1.msra.mxu0 0.0
    %1623 = vmatprep.subr.mxu0 0.0
    %1624 = vmatpush1.msra.mxu0 0.0
    %1625 = vmatprep.subr.mxu0 0.0
    %1626 = vmatpush1.msra.mxu0 0.0
    %1627 = vmatprep.subr.mxu0 0.0
    %1628 = vmatpush1.msra.mxu0 0.0
    %1629 = vmatprep.subr.mxu0 0.0
    %1630 = vmatpush1.msra.mxu0 0.0
    %1631 = vmatprep.subr.mxu0 0.0
    %1632 = vmatpush1.msra.mxu0 0.0
    %1633 = vmatprep.subr.mxu0 0.0
    %1634 = vmatpush1.msra.mxu0 0.0
    %1635 = vmatprep.subr.mxu0 0.0
    %1636 = vmatpush1.msra.mxu0 0.0
    %1637 = vmatprep.subr.mxu0 0.0
    %1638 = vmatpush1.msra.mxu0 0.0
    %1639 = vmatprep.subr.mxu0 0.0
    %1640 = vmatpush1.msra.mxu0 0.0
    %1641 = vmatprep.subr.mxu0 0.0
    %1642 = vmatpush1.msra.mxu0 0.0
    %1643 = vmatprep.subr.mxu0 0.0
    %1644 = vmatpush1.msra.mxu0 0.0
    %1645 = vmatprep.subr.mxu0 0.0
    %1646 = vmatpush1.msra.mxu0 0.0
    %1647 = vmatprep.subr.mxu0 0.0
    %1648 = vmatpush1.msra.mxu0 0.0
    %1649 = vmatprep.subr.mxu0 0.0
    %1650 = vmatpush1.msra.mxu0 0.0
    %1651 = vmatprep.subr.mxu0 0.0
    %1652 = vmatpush1.msra.mxu0 0.0
    %1653 = vmatprep.subr.mxu0 0.0
    %1654 = vmatpush1.msra.mxu0 0.0
    %1655 = vmatprep.subr.mxu0 0.0
    %1656 = vmatpush1.msra.mxu0 0.0
    %1657 = vmatprep.mubr.f32.mxu0 0.0
    %v1658 = vand.u32 %v134, 4294901760
    %1659 = vmatmul.mubr.f32.gmra.mrb[0].mxu0 %v1658
    %v1660 = vpop.f32.mrb[0].mxu0
    %v1661 = vadd.f32 %v1529, %v1660
    %v1662 = vpop.f32.mrb[0].mxu0
    %v1663 = vadd.f32 %v1531, %v1662
    %1664 = vdwg.mxu0
    %v1665 = vand.u32 %v1410, 4294901760
    %v1666 = vsub.f32 %v1410, %v1665
    %1667 = vmatprep.subr.mxu0 %v1666
    %v1668 = vand.u32 %v1409, 4294901760
    %v1669 = vsub.f32 %v1409, %v1668
    %1670 = vmatpush1.msra.mxu0 %v1669
    %v1671 = vand.u32 %v1414, 4294901760
    %v1672 = vsub.f32 %v1414, %v1671
    %1673 = vmatprep.subr.mxu0 %v1672
    %v1674 = vand.u32 %v1413, 4294901760
    %v1675 = vsub.f32 %v1413, %v1674
    %1676 = vmatpush1.msra.mxu0 %v1675
    %v1677 = vand.u32 %v1418, 4294901760
    %v1678 = vsub.f32 %v1418, %v1677
    %1679 = vmatprep.subr.mxu0 %v1678
    %v1680 = vand.u32 %v1417, 4294901760
    %v1681 = vsub.f32 %v1417, %v1680
    %1682 = vmatpush1.msra.mxu0 %v1681
    %v1683 = vand.u32 %v1422, 4294901760
    %v1684 = vsub.f32 %v1422, %v1683
    %1685 = vmatprep.subr.mxu0 %v1684
    %v1686 = vand.u32 %v1421, 4294901760
    %v1687 = vsub.f32 %v1421, %v1686
    %1688 = vmatpush1.msra.mxu0 %v1687
    %v1689 = vand.u32 %v1426, 4294901760
    %v1690 = vsub.f32 %v1426, %v1689
    %1691 = vmatprep.subr.mxu0 %v1690
    %v1692 = vand.u32 %v1425, 4294901760
    %v1693 = vsub.f32 %v1425, %v1692
    %1694 = vmatpush1.msra.mxu0 %v1693
    %v1695 = vand.u32 %v1437, 4294901760
    %v1696 = vsub.f32 %v1437, %v1695
    %1697 = vmatprep.subr.mxu0 %v1696
    %v1698 = vand.u32 %v1434, 4294901760
    %v1699 = vsub.f32 %v1434, %v1698
    %1700 = vmatpush1.msra.mxu0 %v1699
    %1701 = vmatprep.subr.mxu0 0.0
    %1702 = vmatpush1.msra.mxu0 0.0
    %1703 = vmatprep.subr.mxu0 0.0
    %1704 = vmatpush1.msra.mxu0 0.0
    %1705 = vmatprep.subr.mxu0 0.0
    %1706 = vmatpush1.msra.mxu0 0.0
    %1707 = vmatprep.subr.mxu0 0.0
    %1708 = vmatpush1.msra.mxu0 0.0
    %1709 = vmatprep.subr.mxu0 0.0
    %1710 = vmatpush1.msra.mxu0 0.0
    %1711 = vmatprep.subr.mxu0 0.0
    %1712 = vmatpush1.msra.mxu0 0.0
    %1713 = vmatprep.subr.mxu0 0.0
    %1714 = vmatpush1.msra.mxu0 0.0
    %1715 = vmatprep.subr.mxu0 0.0
    %1716 = vmatpush1.msra.mxu0 0.0
    %1717 = vmatprep.subr.mxu0 0.0
    %1718 = vmatpush1.msra.mxu0 0.0
    %1719 = vmatprep.subr.mxu0 0.0
    %1720 = vmatpush1.msra.mxu0 0.0
    %1721 = vmatprep.subr.mxu0 0.0
    %1722 = vmatpush1.msra.mxu0 0.0
    %1723 = vmatprep.subr.mxu0 0.0
    %1724 = vmatpush1.msra.mxu0 0.0
    %1725 = vmatprep.subr.mxu0 0.0
    %1726 = vmatpush1.msra.mxu0 0.0
    %1727 = vmatprep.subr.mxu0 0.0
    %1728 = vmatpush1.msra.mxu0 0.0
    %1729 = vmatprep.subr.mxu0 0.0
    %1730 = vmatpush1.msra.mxu0 0.0
    %1731 = vmatprep.subr.mxu0 0.0
    %1732 = vmatpush1.msra.mxu0 0.0
    %1733 = vmatprep.subr.mxu0 0.0
    %1734 = vmatpush1.msra.mxu0 0.0
    %1735 = vmatprep.subr.mxu0 0.0
    %1736 = vmatpush1.msra.mxu0 0.0
    %1737 = vmatprep.subr.mxu0 0.0
    %1738 = vmatpush1.msra.mxu0 0.0
    %1739 = vmatprep.subr.mxu0 0.0
    %1740 = vmatpush1.msra.mxu0 0.0
    %1741 = vmatprep.subr.mxu0 0.0
    %1742 = vmatpush1.msra.mxu0 0.0
    %1743 = vmatprep.subr.mxu0 0.0
    %1744 = vmatpush1.msra.mxu0 0.0
    %1745 = vmatprep.subr.mxu0 0.0
    %1746 = vmatpush1.msra.mxu0 0.0
    %1747 = vmatprep.subr.mxu0 0.0
    %1748 = vmatpush1.msra.mxu0 0.0
    %1749 = vmatprep.subr.mxu0 0.0
    %1750 = vmatpush1.msra.mxu0 0.0
    %1751 = vmatprep.subr.mxu0 0.0
    %1752 = vmatpush1.msra.mxu0 0.0
    %1753 = vmatprep.mubr.f32.mxu0 0.0
    %v1754 = vand.u32 %v134, 4294901760
    %v1755 = vsub.f32 %v134, %v1754
    %1756 = vmatmul.mubr.f32.gmra.mrb[0].mxu0 %v1755
    %v1757 = vpop.f32.mrb[0].mxu0
    %v1758 = vadd.f32 %v1661, %v1757
    %v1759 = vpop.f32.mrb[0].mxu0
    %v1760 = vadd.f32 %v1663, %v1759
    %1761 = vdwg.mxu0
    %v1762 = vand.u32 %v1410, 4294901760
    %1763 = vmatprep.subr.mxu0 %v1762
    %v1764 = vand.u32 %v1409, 4294901760
    %1765 = vmatpush1.msra.mxu0 %v1764
    %v1766 = vand.u32 %v1414, 4294901760
    %1767 = vmatprep.subr.mxu0 %v1766
    %v1768 = vand.u32 %v1413, 4294901760
    %1769 = vmatpush1.msra.mxu0 %v1768
    %v1770 = vand.u32 %v1418, 4294901760
    %1771 = vmatprep.subr.mxu0 %v1770
    %v1772 = vand.u32 %v1417, 4294901760
    %1773 = vmatpush1.msra.mxu0 %v1772
    %v1774 = vand.u32 %v1422, 4294901760
    %1775 = vmatprep.subr.mxu0 %v1774
    %v1776 = vand.u32 %v1421, 4294901760
    %1777 = vmatpush1.msra.mxu0 %v1776
    %v1778 = vand.u32 %v1426, 4294901760
    %1779 = vmatprep.subr.mxu0 %v1778
    %v1780 = vand.u32 %v1425, 4294901760
    %1781 = vmatpush1.msra.mxu0 %v1780
    %v1782 = vand.u32 %v1437, 4294901760
    %1783 = vmatprep.subr.mxu0 %v1782
    %v1784 = vand.u32 %v1434, 4294901760
    %1785 = vmatpush1.msra.mxu0 %v1784
    %1786 = vmatprep.subr.mxu0 0.0
    %1787 = vmatpush1.msra.mxu0 0.0
    %1788 = vmatprep.subr.mxu0 0.0
    %1789 = vmatpush1.msra.mxu0 0.0
    %1790 = vmatprep.subr.mxu0 0.0
    %1791 = vmatpush1.msra.mxu0 0.0
    %1792 = vmatprep.subr.mxu0 0.0
    %1793 = vmatpush1.msra.mxu0 0.0
    %1794 = vmatprep.subr.mxu0 0.0
    %1795 = vmatpush1.msra.mxu0 0.0
    %1796 = vmatprep.subr.mxu0 0.0
    %1797 = vmatpush1.msra.mxu0 0.0
    %1798 = vmatprep.subr.mxu0 0.0
    %1799 = vmatpush1.msra.mxu0 0.0
    %1800 = vmatprep.subr.mxu0 0.0
    %1801 = vmatpush1.msra.mxu0 0.0
    %1802 = vmatprep.subr.mxu0 0.0
    %1803 = vmatpush1.msra.mxu0 0.0
    %1804 = vmatprep.subr.mxu0 0.0
    %1805 = vmatpush1.msra.mxu0 0.0
    %1806 = vmatprep.subr.mxu0 0.0
    %1807 = vmatpush1.msra.mxu0 0.0
    %1808 = vmatprep.subr.mxu0 0.0
    %1809 = vmatpush1.msra.mxu0 0.0
    %1810 = vmatprep.subr.mxu0 0.0
    %1811 = vmatpush1.msra.mxu0 0.0
    %1812 = vmatprep.subr.mxu0 0.0
    %1813 = vmatpush1.msra.mxu0 0.0
    %1814 = vmatprep.subr.mxu0 0.0
    %1815 = vmatpush1.msra.mxu0 0.0
    %1816 = vmatprep.subr.mxu0 0.0
    %1817 = vmatpush1.msra.mxu0 0.0
    %1818 = vmatprep.subr.mxu0 0.0
    %1819 = vmatpush1.msra.mxu0 0.0
    %1820 = vmatprep.subr.mxu0 0.0
    %1821 = vmatpush1.msra.mxu0 0.0
    %1822 = vmatprep.subr.mxu0 0.0
    %1823 = vmatpush1.msra.mxu0 0.0
    %1824 = vmatprep.subr.mxu0 0.0
    %1825 = vmatpush1.msra.mxu0 0.0
    %1826 = vmatprep.subr.mxu0 0.0
    %1827 = vmatpush1.msra.mxu0 0.0
    %1828 = vmatprep.subr.mxu0 0.0
    %1829 = vmatpush1.msra.mxu0 0.0
    %1830 = vmatprep.subr.mxu0 0.0
    %1831 = vmatpush1.msra.mxu0 0.0
    %1832 = vmatprep.subr.mxu0 0.0
    %1833 = vmatpush1.msra.mxu0 0.0
    %1834 = vmatprep.subr.mxu0 0.0
    %1835 = vmatpush1.msra.mxu0 0.0
    %1836 = vmatprep.subr.mxu0 0.0
    %1837 = vmatpush1.msra.mxu0 0.0
    %1838 = vmatprep.mubr.f32.mxu0 0.0
    %v1839 = vand.u32 %v134, 4294901760
    %v1840 = vsub.f32 %v134, %v1839
    %v1841 = vand.u32 %v1840, 4294901760
    %1842 = vmatmul.mubr.f32.gmra.mrb[0].mxu0 %v1841
    %v1843 = vpop.f32.mrb[0].mxu0
    %v1844 = vadd.f32 %v1758, %v1843
    %v1845 = vpop.f32.mrb[0].mxu0
    %v1846 = vadd.f32 %v1760, %v1845
    %1847 = vdwg.mxu0
    %v1848 = vand.u32 %v1410, 4294901760
    %v1849 = vsub.f32 %v1410, %v1848
    %v1850 = vand.u32 %v1849, 4294901760
    %1851 = vmatprep.subr.mxu0 %v1850
    %v1852 = vand.u32 %v1409, 4294901760
    %v1853 = vsub.f32 %v1409, %v1852
    %v1854 = vand.u32 %v1853, 4294901760
    %1855 = vmatpush1.msra.mxu0 %v1854
    %v1856 = vand.u32 %v1414, 4294901760
    %v1857 = vsub.f32 %v1414, %v1856
    %v1858 = vand.u32 %v1857, 4294901760
    %1859 = vmatprep.subr.mxu0 %v1858
    %v1860 = vand.u32 %v1413, 4294901760
    %v1861 = vsub.f32 %v1413, %v1860
    %v1862 = vand.u32 %v1861, 4294901760
    %1863 = vmatpush1.msra.mxu0 %v1862
    %v1864 = vand.u32 %v1418, 4294901760
    %v1865 = vsub.f32 %v1418, %v1864
    %v1866 = vand.u32 %v1865, 4294901760
    %1867 = vmatprep.subr.mxu0 %v1866
    %v1868 = vand.u32 %v1417, 4294901760
    %v1869 = vsub.f32 %v1417, %v1868
    %v1870 = vand.u32 %v1869, 4294901760
    %1871 = vmatpush1.msra.mxu0 %v1870
    %v1872 = vand.u32 %v1422, 4294901760
    %v1873 = vsub.f32 %v1422, %v1872
    %v1874 = vand.u32 %v1873, 4294901760
    %1875 = vmatprep.subr.mxu0 %v1874
    %v1876 = vand.u32 %v1421, 4294901760
    %v1877 = vsub.f32 %v1421, %v1876
    %v1878 = vand.u32 %v1877, 4294901760
    %1879 = vmatpush1.msra.mxu0 %v1878
    %v1880 = vand.u32 %v1426, 4294901760
    %v1881 = vsub.f32 %v1426, %v1880
    %v1882 = vand.u32 %v1881, 4294901760
    %1883 = vmatprep.subr.mxu0 %v1882
    %v1884 = vand.u32 %v1425, 4294901760
    %v1885 = vsub.f32 %v1425, %v1884
    %v1886 = vand.u32 %v1885, 4294901760
    %1887 = vmatpush1.msra.mxu0 %v1886
    %v1888 = vand.u32 %v1437, 4294901760
    %v1889 = vsub.f32 %v1437, %v1888
    %v1890 = vand.u32 %v1889, 4294901760
    %1891 = vmatprep.subr.mxu0 %v1890
    %v1892 = vand.u32 %v1434, 4294901760
    %v1893 = vsub.f32 %v1434, %v1892
    %v1894 = vand.u32 %v1893, 4294901760
    %1895 = vmatpush1.msra.mxu0 %v1894
    %1896 = vmatprep.subr.mxu0 0.0
    %1897 = vmatpush1.msra.mxu0 0.0
    %1898 = vmatprep.subr.mxu0 0.0
    %1899 = vmatpush1.msra.mxu0 0.0
    %1900 = vmatprep.subr.mxu0 0.0
    %1901 = vmatpush1.msra.mxu0 0.0
    %1902 = vmatprep.subr.mxu0 0.0
    %1903 = vmatpush1.msra.mxu0 0.0
    %1904 = vmatprep.subr.mxu0 0.0
    %1905 = vmatpush1.msra.mxu0 0.0
    %1906 = vmatprep.subr.mxu0 0.0
    %1907 = vmatpush1.msra.mxu0 0.0
    %1908 = vmatprep.subr.mxu0 0.0
    %1909 = vmatpush1.msra.mxu0 0.0
    %1910 = vmatprep.subr.mxu0 0.0
    %1911 = vmatpush1.msra.mxu0 0.0
    %1912 = vmatprep.subr.mxu0 0.0
    %1913 = vmatpush1.msra.mxu0 0.0
    %1914 = vmatprep.subr.mxu0 0.0
    %1915 = vmatpush1.msra.mxu0 0.0
    %1916 = vmatprep.subr.mxu0 0.0
    %1917 = vmatpush1.msra.mxu0 0.0
    %1918 = vmatprep.subr.mxu0 0.0
    %1919 = vmatpush1.msra.mxu0 0.0
    %1920 = vmatprep.subr.mxu0 0.0
    %1921 = vmatpush1.msra.mxu0 0.0
    %1922 = vmatprep.subr.mxu0 0.0
    %1923 = vmatpush1.msra.mxu0 0.0
    %1924 = vmatprep.subr.mxu0 0.0
    %1925 = vmatpush1.msra.mxu0 0.0
    %1926 = vmatprep.subr.mxu0 0.0
    %1927 = vmatpush1.msra.mxu0 0.0
    %1928 = vmatprep.subr.mxu0 0.0
    %1929 = vmatpush1.msra.mxu0 0.0
    %1930 = vmatprep.subr.mxu0 0.0
    %1931 = vmatpush1.msra.mxu0 0.0
    %1932 = vmatprep.subr.mxu0 0.0
    %1933 = vmatpush1.msra.mxu0 0.0
    %1934 = vmatprep.subr.mxu0 0.0
    %1935 = vmatpush1.msra.mxu0 0.0
    %1936 = vmatprep.subr.mxu0 0.0
    %1937 = vmatpush1.msra.mxu0 0.0
    %1938 = vmatprep.subr.mxu0 0.0
    %1939 = vmatpush1.msra.mxu0 0.0
    %1940 = vmatprep.subr.mxu0 0.0
    %1941 = vmatpush1.msra.mxu0 0.0
    %1942 = vmatprep.subr.mxu0 0.0
    %1943 = vmatpush1.msra.mxu0 0.0
    %1944 = vmatprep.subr.mxu0 0.0
    %1945 = vmatpush1.msra.mxu0 0.0
    %1946 = vmatprep.subr.mxu0 0.0
    %1947 = vmatpush1.msra.mxu0 0.0
    %1948 = vmatprep.mubr.f32.mxu0 0.0
    %v1949 = vand.u32 %v134, 4294901760
    %1950 = vmatmul.mubr.f32.gmra.mrb[0].mxu0 %v1949
    %v1951 = vpop.f32.mrb[0].mxu0
    %v1952 = vadd.f32 %v1844, %v1951
    %v1953 = vpop.f32.mrb[0].mxu0
    %v1954 = vadd.f32 %v1846, %v1953
    %1955 = vdwg.mxu0
    %v1956 = vand.u32 %v1410, 4294901760
    %1957 = vmatprep.subr.mxu0 %v1956
    %v1958 = vand.u32 %v1409, 4294901760
    %1959 = vmatpush1.msra.mxu0 %v1958
    %v1960 = vand.u32 %v1414, 4294901760
    %1961 = vmatprep.subr.mxu0 %v1960
    %v1962 = vand.u32 %v1413, 4294901760
    %1963 = vmatpush1.msra.mxu0 %v1962
    %v1964 = vand.u32 %v1418, 4294901760
    %1965 = vmatprep.subr.mxu0 %v1964
    %v1966 = vand.u32 %v1417, 4294901760
    %1967 = vmatpush1.msra.mxu0 %v1966
    %v1968 = vand.u32 %v1422, 4294901760
    %1969 = vmatprep.subr.mxu0 %v1968
    %v1970 = vand.u32 %v1421, 4294901760
    %1971 = vmatpush1.msra.mxu0 %v1970
    %v1972 = vand.u32 %v1426, 4294901760
    %1973 = vmatprep.subr.mxu0 %v1972
    %v1974 = vand.u32 %v1425, 4294901760
    %1975 = vmatpush1.msra.mxu0 %v1974
    %v1976 = vand.u32 %v1437, 4294901760
    %1977 = vmatprep.subr.mxu0 %v1976
    %v1978 = vand.u32 %v1434, 4294901760
    %1979 = vmatpush1.msra.mxu0 %v1978
    %1980 = vmatprep.subr.mxu0 0.0
    %1981 = vmatpush1.msra.mxu0 0.0
    %1982 = vmatprep.subr.mxu0 0.0
    %1983 = vmatpush1.msra.mxu0 0.0
    %1984 = vmatprep.subr.mxu0 0.0
    %1985 = vmatpush1.msra.mxu0 0.0
    %1986 = vmatprep.subr.mxu0 0.0
    %1987 = vmatpush1.msra.mxu0 0.0
    %1988 = vmatprep.subr.mxu0 0.0
    %1989 = vmatpush1.msra.mxu0 0.0
    %1990 = vmatprep.subr.mxu0 0.0
    %1991 = vmatpush1.msra.mxu0 0.0
    %1992 = vmatprep.subr.mxu0 0.0
    %1993 = vmatpush1.msra.mxu0 0.0
    %1994 = vmatprep.subr.mxu0 0.0
    %1995 = vmatpush1.msra.mxu0 0.0
    %1996 = vmatprep.subr.mxu0 0.0
    %1997 = vmatpush1.msra.mxu0 0.0
    %1998 = vmatprep.subr.mxu0 0.0
    %1999 = vmatpush1.msra.mxu0 0.0
    %2000 = vmatprep.subr.mxu0 0.0
    %2001 = vmatpush1.msra.mxu0 0.0
    %2002 = vmatprep.subr.mxu0 0.0
    %2003 = vmatpush1.msra.mxu0 0.0
    %2004 = vmatprep.subr.mxu0 0.0
    %2005 = vmatpush1.msra.mxu0 0.0
    %2006 = vmatprep.subr.mxu0 0.0
    %2007 = vmatpush1.msra.mxu0 0.0
    %2008 = vmatprep.subr.mxu0 0.0
    %2009 = vmatpush1.msra.mxu0 0.0
    %2010 = vmatprep.subr.mxu0 0.0
    %2011 = vmatpush1.msra.mxu0 0.0
    %2012 = vmatprep.subr.mxu0 0.0
    %2013 = vmatpush1.msra.mxu0 0.0
    %2014 = vmatprep.subr.mxu0 0.0
    %2015 = vmatpush1.msra.mxu0 0.0
    %2016 = vmatprep.subr.mxu0 0.0
    %2017 = vmatpush1.msra.mxu0 0.0
    %2018 = vmatprep.subr.mxu0 0.0
    %2019 = vmatpush1.msra.mxu0 0.0
    %2020 = vmatprep.subr.mxu0 0.0
    %2021 = vmatpush1.msra.mxu0 0.0
    %2022 = vmatprep.subr.mxu0 0.0
    %2023 = vmatpush1.msra.mxu0 0.0
    %2024 = vmatprep.subr.mxu0 0.0
    %2025 = vmatpush1.msra.mxu0 0.0
    %2026 = vmatprep.subr.mxu0 0.0
    %2027 = vmatpush1.msra.mxu0 0.0
    %2028 = vmatprep.subr.mxu0 0.0
    %2029 = vmatpush1.msra.mxu0 0.0
    %2030 = vmatprep.subr.mxu0 0.0
    %2031 = vmatpush1.msra.mxu0 0.0
    %2032 = vmatprep.mubr.f32.mxu0 0.0
    %v2033 = vand.u32 %v134, 4294901760
    %2034 = vmatmul.mubr.f32.gmra.mrb[0].mxu0 %v2033
    %v2035 = vpop.f32.mrb[0].mxu0
    %v2036 = vadd.f32 %v1952, %v2035
    %v2037 = vpop.f32.mrb[0].mxu0
    %v2038 = vadd.f32 %v1954, %v2037
    %2039 = vdwg.mxu0
    %v2040 = vand.u32 %v1412, 4294901760
    %2041 = vmatprep.subr.mxu0 %v2040
    %v2042 = vand.u32 %v1411, 4294901760
    %2043 = vmatpush1.msra.mxu0 %v2042
    %v2044 = vand.u32 %v1416, 4294901760
    %2045 = vmatprep.subr.mxu0 %v2044
    %v2046 = vand.u32 %v1415, 4294901760
    %2047 = vmatpush1.msra.mxu0 %v2046
    %v2048 = vand.u32 %v1420, 4294901760
    %2049 = vmatprep.subr.mxu0 %v2048
    %v2050 = vand.u32 %v1419, 4294901760
    %2051 = vmatpush1.msra.mxu0 %v2050
    %v2052 = vand.u32 %v1424, 4294901760
    %2053 = vmatprep.subr.mxu0 %v2052
    %v2054 = vand.u32 %v1423, 4294901760
    %2055 = vmatpush1.msra.mxu0 %v2054
    %v2056 = vand.u32 %v1428, 4294901760
    %2057 = vmatprep.subr.mxu0 %v2056
    %v2058 = vand.u32 %v1427, 4294901760
    %2059 = vmatpush1.msra.mxu0 %v2058
    %v2060 = vand.u32 %v1443, 4294901760
    %2061 = vmatprep.subr.mxu0 %v2060
    %v2062 = vand.u32 %v1440, 4294901760
    %2063 = vmatpush1.msra.mxu0 %v2062
    %2064 = vmatprep.subr.mxu0 0.0
    %2065 = vmatpush1.msra.mxu0 0.0
    %2066 = vmatprep.subr.mxu0 0.0
    %2067 = vmatpush1.msra.mxu0 0.0
    %2068 = vmatprep.subr.mxu0 0.0
    %2069 = vmatpush1.msra.mxu0 0.0
    %2070 = vmatprep.subr.mxu0 0.0
    %2071 = vmatpush1.msra.mxu0 0.0
    %2072 = vmatprep.subr.mxu0 0.0
    %2073 = vmatpush1.msra.mxu0 0.0
    %2074 = vmatprep.subr.mxu0 0.0
    %2075 = vmatpush1.msra.mxu0 0.0
    %2076 = vmatprep.subr.mxu0 0.0
    %2077 = vmatpush1.msra.mxu0 0.0
    %2078 = vmatprep.subr.mxu0 0.0
    %2079 = vmatpush1.msra.mxu0 0.0
    %2080 = vmatprep.subr.mxu0 0.0
    %2081 = vmatpush1.msra.mxu0 0.0
    %2082 = vmatprep.subr.mxu0 0.0
    %2083 = vmatpush1.msra.mxu0 0.0
    %2084 = vmatprep.subr.mxu0 0.0
    %2085 = vmatpush1.msra.mxu0 0.0
    %2086 = vmatprep.subr.mxu0 0.0
    %2087 = vmatpush1.msra.mxu0 0.0
    %2088 = vmatprep.subr.mxu0 0.0
    %2089 = vmatpush1.msra.mxu0 0.0
    %2090 = vmatprep.subr.mxu0 0.0
    %2091 = vmatpush1.msra.mxu0 0.0
    %2092 = vmatprep.subr.mxu0 0.0
    %2093 = vmatpush1.msra.mxu0 0.0
    %2094 = vmatprep.subr.mxu0 0.0
    %2095 = vmatpush1.msra.mxu0 0.0
    %2096 = vmatprep.subr.mxu0 0.0
    %2097 = vmatpush1.msra.mxu0 0.0
    %2098 = vmatprep.subr.mxu0 0.0
    %2099 = vmatpush1.msra.mxu0 0.0
    %2100 = vmatprep.subr.mxu0 0.0
    %2101 = vmatpush1.msra.mxu0 0.0
    %2102 = vmatprep.subr.mxu0 0.0
    %2103 = vmatpush1.msra.mxu0 0.0
    %2104 = vmatprep.subr.mxu0 0.0
    %2105 = vmatpush1.msra.mxu0 0.0
    %2106 = vmatprep.subr.mxu0 0.0
    %2107 = vmatpush1.msra.mxu0 0.0
    %2108 = vmatprep.subr.mxu0 0.0
    %2109 = vmatpush1.msra.mxu0 0.0
    %2110 = vmatprep.subr.mxu0 0.0
    %2111 = vmatpush1.msra.mxu0 0.0
    %2112 = vmatprep.subr.mxu0 0.0
    %2113 = vmatpush1.msra.mxu0 0.0
    %2114 = vmatprep.subr.mxu0 0.0
    %2115 = vmatpush1.msra.mxu0 0.0
    %2116 = vmatprep.mubr.f32.mxu0 0.0
    %v2117 = vand.u32 %v134, 4294901760
    %v2118 = vsub.f32 %v134, %v2117
    %v2119 = vand.u32 %v2118, 4294901760
    %v2120 = vsub.f32 %v2118, %v2119
    %v2121 = vand.u32 %v2120, 4294901760
    %2122 = vmatmul.mubr.f32.gmra.mrb[0].mxu0 %v2121
    %v2123 = vpop.f32.mrb[0].mxu0
    %v2124 = vadd.f32 0.0, %v2123
    %v2125 = vpop.f32.mrb[0].mxu0
    %v2126 = vadd.f32 0.0, %v2125
    %2127 = vdwg.mxu0
    %v2128 = vand.u32 %v1412, 4294901760
    %v2129 = vsub.f32 %v1412, %v2128
    %v2130 = vand.u32 %v2129, 4294901760
    %v2131 = vsub.f32 %v2129, %v2130
    %v2132 = vand.u32 %v2131, 4294901760
    %2133 = vmatprep.subr.mxu0 %v2132
    %v2134 = vand.u32 %v1411, 4294901760
    %v2135 = vsub.f32 %v1411, %v2134
    %v2136 = vand.u32 %v2135, 4294901760
    %v2137 = vsub.f32 %v2135, %v2136
    %v2138 = vand.u32 %v2137, 4294901760
    %2139 = vmatpush1.msra.mxu0 %v2138
    %v2140 = vand.u32 %v1416, 4294901760
    %v2141 = vsub.f32 %v1416, %v2140
    %v2142 = vand.u32 %v2141, 4294901760
    %v2143 = vsub.f32 %v2141, %v2142
    %v2144 = vand.u32 %v2143, 4294901760
    %2145 = vmatprep.subr.mxu0 %v2144
    %v2146 = vand.u32 %v1415, 4294901760
    %v2147 = vsub.f32 %v1415, %v2146
    %v2148 = vand.u32 %v2147, 4294901760
    %v2149 = vsub.f32 %v2147, %v2148
    %v2150 = vand.u32 %v2149, 4294901760
    %2151 = vmatpush1.msra.mxu0 %v2150
    %v2152 = vand.u32 %v1420, 4294901760
    %v2153 = vsub.f32 %v1420, %v2152
    %v2154 = vand.u32 %v2153, 4294901760
    %v2155 = vsub.f32 %v2153, %v2154
    %v2156 = vand.u32 %v2155, 4294901760
    %2157 = vmatprep.subr.mxu0 %v2156
    %v2158 = vand.u32 %v1419, 4294901760
    %v2159 = vsub.f32 %v1419, %v2158
    %v2160 = vand.u32 %v2159, 4294901760
    %v2161 = vsub.f32 %v2159, %v2160
    %v2162 = vand.u32 %v2161, 4294901760
    %2163 = vmatpush1.msra.mxu0 %v2162
    %v2164 = vand.u32 %v1424, 4294901760
    %v2165 = vsub.f32 %v1424, %v2164
    %v2166 = vand.u32 %v2165, 4294901760
    %v2167 = vsub.f32 %v2165, %v2166
    %v2168 = vand.u32 %v2167, 4294901760
    %2169 = vmatprep.subr.mxu0 %v2168
    %v2170 = vand.u32 %v1423, 4294901760
    %v2171 = vsub.f32 %v1423, %v2170
    %v2172 = vand.u32 %v2171, 4294901760
    %v2173 = vsub.f32 %v2171, %v2172
    %v2174 = vand.u32 %v2173, 4294901760
    %2175 = vmatpush1.msra.mxu0 %v2174
    %v2176 = vand.u32 %v1428, 4294901760
    %v2177 = vsub.f32 %v1428, %v2176
    %v2178 = vand.u32 %v2177, 4294901760
    %v2179 = vsub.f32 %v2177, %v2178
    %v2180 = vand.u32 %v2179, 4294901760
    %2181 = vmatprep.subr.mxu0 %v2180
    %v2182 = vand.u32 %v1427, 4294901760
    %v2183 = vsub.f32 %v1427, %v2182
    %v2184 = vand.u32 %v2183, 4294901760
    %v2185 = vsub.f32 %v2183, %v2184
    %v2186 = vand.u32 %v2185, 4294901760
    %2187 = vmatpush1.msra.mxu0 %v2186
    %v2188 = vand.u32 %v1443, 4294901760
    %v2189 = vsub.f32 %v1443, %v2188
    %v2190 = vand.u32 %v2189, 4294901760
    %v2191 = vsub.f32 %v2189, %v2190
    %v2192 = vand.u32 %v2191, 4294901760
    %2193 = vmatprep.subr.mxu0 %v2192
    %v2194 = vand.u32 %v1440, 4294901760
    %v2195 = vsub.f32 %v1440, %v2194
    %v2196 = vand.u32 %v2195, 4294901760
    %v2197 = vsub.f32 %v2195, %v2196
    %v2198 = vand.u32 %v2197, 4294901760
    %2199 = vmatpush1.msra.mxu0 %v2198
    %2200 = vmatprep.subr.mxu0 0.0
    %2201 = vmatpush1.msra.mxu0 0.0
    %2202 = vmatprep.subr.mxu0 0.0
    %2203 = vmatpush1.msra.mxu0 0.0
    %2204 = vmatprep.subr.mxu0 0.0
    %2205 = vmatpush1.msra.mxu0 0.0
    %2206 = vmatprep.subr.mxu0 0.0
    %2207 = vmatpush1.msra.mxu0 0.0
    %2208 = vmatprep.subr.mxu0 0.0
    %2209 = vmatpush1.msra.mxu0 0.0
    %2210 = vmatprep.subr.mxu0 0.0
    %2211 = vmatpush1.msra.mxu0 0.0
    %2212 = vmatprep.subr.mxu0 0.0
    %2213 = vmatpush1.msra.mxu0 0.0
    %2214 = vmatprep.subr.mxu0 0.0
    %2215 = vmatpush1.msra.mxu0 0.0
    %2216 = vmatprep.subr.mxu0 0.0
    %2217 = vmatpush1.msra.mxu0 0.0
    %2218 = vmatprep.subr.mxu0 0.0
    %2219 = vmatpush1.msra.mxu0 0.0
    %2220 = vmatprep.subr.mxu0 0.0
    %2221 = vmatpush1.msra.mxu0 0.0
    %2222 = vmatprep.subr.mxu0 0.0
    %2223 = vmatpush1.msra.mxu0 0.0
    %2224 = vmatprep.subr.mxu0 0.0
    %2225 = vmatpush1.msra.mxu0 0.0
    %2226 = vmatprep.subr.mxu0 0.0
    %2227 = vmatpush1.msra.mxu0 0.0
    %2228 = vmatprep.subr.mxu0 0.0
    %2229 = vmatpush1.msra.mxu0 0.0
    %2230 = vmatprep.subr.mxu0 0.0
    %2231 = vmatpush1.msra.mxu0 0.0
    %2232 = vmatprep.subr.mxu0 0.0
    %2233 = vmatpush1.msra.mxu0 0.0
    %2234 = vmatprep.subr.mxu0 0.0
    %2235 = vmatpush1.msra.mxu0 0.0
    %2236 = vmatprep.subr.mxu0 0.0
    %2237 = vmatpush1.msra.mxu0 0.0
    %2238 = vmatprep.subr.mxu0 0.0
    %2239 = vmatpush1.msra.mxu0 0.0
    %2240 = vmatprep.subr.mxu0 0.0
    %2241 = vmatpush1.msra.mxu0 0.0
    %2242 = vmatprep.subr.mxu0 0.0
    %2243 = vmatpush1.msra.mxu0 0.0
    %2244 = vmatprep.subr.mxu0 0.0
    %2245 = vmatpush1.msra.mxu0 0.0
    %2246 = vmatprep.subr.mxu0 0.0
    %2247 = vmatpush1.msra.mxu0 0.0
    %2248 = vmatprep.subr.mxu0 0.0
    %2249 = vmatpush1.msra.mxu0 0.0
    %2250 = vmatprep.subr.mxu0 0.0
    %2251 = vmatpush1.msra.mxu0 0.0
    %2252 = vmatprep.mubr.f32.mxu0 0.0
    %v2253 = vand.u32 %v134, 4294901760
    %2254 = vmatmul.mubr.f32.gmra.mrb[0].mxu0 %v2253
    %v2255 = vpop.f32.mrb[0].mxu0
    %v2256 = vadd.f32 %v2124, %v2255
    %v2257 = vpop.f32.mrb[0].mxu0
    %v2258 = vadd.f32 %v2126, %v2257
    %2259 = vdwg.mxu0
    %v2260 = vand.u32 %v1412, 4294901760
    %v2261 = vsub.f32 %v1412, %v2260
    %2262 = vmatprep.subr.mxu0 %v2261
    %v2263 = vand.u32 %v1411, 4294901760
    %v2264 = vsub.f32 %v1411, %v2263
    %2265 = vmatpush1.msra.mxu0 %v2264
    %v2266 = vand.u32 %v1416, 4294901760
    %v2267 = vsub.f32 %v1416, %v2266
    %2268 = vmatprep.subr.mxu0 %v2267
    %v2269 = vand.u32 %v1415, 4294901760
    %v2270 = vsub.f32 %v1415, %v2269
    %2271 = vmatpush1.msra.mxu0 %v2270
    %v2272 = vand.u32 %v1420, 4294901760
    %v2273 = vsub.f32 %v1420, %v2272
    %2274 = vmatprep.subr.mxu0 %v2273
    %v2275 = vand.u32 %v1419, 4294901760
    %v2276 = vsub.f32 %v1419, %v2275
    %2277 = vmatpush1.msra.mxu0 %v2276
    %v2278 = vand.u32 %v1424, 4294901760
    %v2279 = vsub.f32 %v1424, %v2278
    %2280 = vmatprep.subr.mxu0 %v2279
    %v2281 = vand.u32 %v1423, 4294901760
    %v2282 = vsub.f32 %v1423, %v2281
    %2283 = vmatpush1.msra.mxu0 %v2282
    %v2284 = vand.u32 %v1428, 4294901760
    %v2285 = vsub.f32 %v1428, %v2284
    %2286 = vmatprep.subr.mxu0 %v2285
    %v2287 = vand.u32 %v1427, 4294901760
    %v2288 = vsub.f32 %v1427, %v2287
    %2289 = vmatpush1.msra.mxu0 %v2288
    %v2290 = vand.u32 %v1443, 4294901760
    %v2291 = vsub.f32 %v1443, %v2290
    %2292 = vmatprep.subr.mxu0 %v2291
    %v2293 = vand.u32 %v1440, 4294901760
    %v2294 = vsub.f32 %v1440, %v2293
    %2295 = vmatpush1.msra.mxu0 %v2294
    %2296 = vmatprep.subr.mxu0 0.0
    %2297 = vmatpush1.msra.mxu0 0.0
    %2298 = vmatprep.subr.mxu0 0.0
    %2299 = vmatpush1.msra.mxu0 0.0
    %2300 = vmatprep.subr.mxu0 0.0
    %2301 = vmatpush1.msra.mxu0 0.0
    %2302 = vmatprep.subr.mxu0 0.0
    %2303 = vmatpush1.msra.mxu0 0.0
    %2304 = vmatprep.subr.mxu0 0.0
    %2305 = vmatpush1.msra.mxu0 0.0
    %2306 = vmatprep.subr.mxu0 0.0
    %2307 = vmatpush1.msra.mxu0 0.0
    %2308 = vmatprep.subr.mxu0 0.0
    %2309 = vmatpush1.msra.mxu0 0.0
    %2310 = vmatprep.subr.mxu0 0.0
    %2311 = vmatpush1.msra.mxu0 0.0
    %2312 = vmatprep.subr.mxu0 0.0
    %2313 = vmatpush1.msra.mxu0 0.0
    %2314 = vmatprep.subr.mxu0 0.0
    %2315 = vmatpush1.msra.mxu0 0.0
    %2316 = vmatprep.subr.mxu0 0.0
    %2317 = vmatpush1.msra.mxu0 0.0
    %2318 = vmatprep.subr.mxu0 0.0
    %2319 = vmatpush1.msra.mxu0 0.0
    %2320 = vmatprep.subr.mxu0 0.0
    %2321 = vmatpush1.msra.mxu0 0.0
    %2322 = vmatprep.subr.mxu0 0.0
    %2323 = vmatpush1.msra.mxu0 0.0
    %2324 = vmatprep.subr.mxu0 0.0
    %2325 = vmatpush1.msra.mxu0 0.0
    %2326 = vmatprep.subr.mxu0 0.0
    %2327 = vmatpush1.msra.mxu0 0.0
    %2328 = vmatprep.subr.mxu0 0.0
    %2329 = vmatpush1.msra.mxu0 0.0
    %2330 = vmatprep.subr.mxu0 0.0
    %2331 = vmatpush1.msra.mxu0 0.0
    %2332 = vmatprep.subr.mxu0 0.0
    %2333 = vmatpush1.msra.mxu0 0.0
    %2334 = vmatprep.subr.mxu0 0.0
    %2335 = vmatpush1.msra.mxu0 0.0
    %2336 = vmatprep.subr.mxu0 0.0
    %2337 = vmatpush1.msra.mxu0 0.0
    %2338 = vmatprep.subr.mxu0 0.0
    %2339 = vmatpush1.msra.mxu0 0.0
    %2340 = vmatprep.subr.mxu0 0.0
    %2341 = vmatpush1.msra.mxu0 0.0
    %2342 = vmatprep.subr.mxu0 0.0
    %2343 = vmatpush1.msra.mxu0 0.0
    %2344 = vmatprep.subr.mxu0 0.0
    %2345 = vmatpush1.msra.mxu0 0.0
    %2346 = vmatprep.subr.mxu0 0.0
    %2347 = vmatpush1.msra.mxu0 0.0
    %2348 = vmatprep.mubr.f32.mxu0 0.0
    %v2349 = vand.u32 %v134, 4294901760
    %v2350 = vsub.f32 %v134, %v2349
    %2351 = vmatmul.mubr.f32.gmra.mrb[0].mxu0 %v2350
    %v2352 = vpop.f32.mrb[0].mxu0
    %v2353 = vadd.f32 %v2256, %v2352
    %v2354 = vpop.f32.mrb[0].mxu0
    %v2355 = vadd.f32 %v2258, %v2354
    %2356 = vdwg.mxu0
    %v2357 = vand.u32 %v1412, 4294901760
    %2358 = vmatprep.subr.mxu0 %v2357
    %v2359 = vand.u32 %v1411, 4294901760
    %2360 = vmatpush1.msra.mxu0 %v2359
    %v2361 = vand.u32 %v1416, 4294901760
    %2362 = vmatprep.subr.mxu0 %v2361
    %v2363 = vand.u32 %v1415, 4294901760
    %2364 = vmatpush1.msra.mxu0 %v2363
    %v2365 = vand.u32 %v1420, 4294901760
    %2366 = vmatprep.subr.mxu0 %v2365
    %v2367 = vand.u32 %v1419, 4294901760
    %2368 = vmatpush1.msra.mxu0 %v2367
    %v2369 = vand.u32 %v1424, 4294901760
    %2370 = vmatprep.subr.mxu0 %v2369
    %v2371 = vand.u32 %v1423, 4294901760
    %2372 = vmatpush1.msra.mxu0 %v2371
    %v2373 = vand.u32 %v1428, 4294901760
    %2374 = vmatprep.subr.mxu0 %v2373
    %v2375 = vand.u32 %v1427, 4294901760
    %2376 = vmatpush1.msra.mxu0 %v2375
    %v2377 = vand.u32 %v1443, 4294901760
    %2378 = vmatprep.subr.mxu0 %v2377
    %v2379 = vand.u32 %v1440, 4294901760
    %2380 = vmatpush1.msra.mxu0 %v2379
    %2381 = vmatprep.subr.mxu0 0.0
    %2382 = vmatpush1.msra.mxu0 0.0
    %2383 = vmatprep.subr.mxu0 0.0
    %2384 = vmatpush1.msra.mxu0 0.0
    %2385 = vmatprep.subr.mxu0 0.0
    %2386 = vmatpush1.msra.mxu0 0.0
    %2387 = vmatprep.subr.mxu0 0.0
    %2388 = vmatpush1.msra.mxu0 0.0
    %2389 = vmatprep.subr.mxu0 0.0
    %2390 = vmatpush1.msra.mxu0 0.0
    %2391 = vmatprep.subr.mxu0 0.0
    %2392 = vmatpush1.msra.mxu0 0.0
    %2393 = vmatprep.subr.mxu0 0.0
    %2394 = vmatpush1.msra.mxu0 0.0
    %2395 = vmatprep.subr.mxu0 0.0
    %2396 = vmatpush1.msra.mxu0 0.0
    %2397 = vmatprep.subr.mxu0 0.0
    %2398 = vmatpush1.msra.mxu0 0.0
    %2399 = vmatprep.subr.mxu0 0.0
    %2400 = vmatpush1.msra.mxu0 0.0
    %2401 = vmatprep.subr.mxu0 0.0
    %2402 = vmatpush1.msra.mxu0 0.0
    %2403 = vmatprep.subr.mxu0 0.0
    %2404 = vmatpush1.msra.mxu0 0.0
    %2405 = vmatprep.subr.mxu0 0.0
    %2406 = vmatpush1.msra.mxu0 0.0
    %2407 = vmatprep.subr.mxu0 0.0
    %2408 = vmatpush1.msra.mxu0 0.0
    %2409 = vmatprep.subr.mxu0 0.0
    %2410 = vmatpush1.msra.mxu0 0.0
    %2411 = vmatprep.subr.mxu0 0.0
    %2412 = vmatpush1.msra.mxu0 0.0
    %2413 = vmatprep.subr.mxu0 0.0
    %2414 = vmatpush1.msra.mxu0 0.0
    %2415 = vmatprep.subr.mxu0 0.0
    %2416 = vmatpush1.msra.mxu0 0.0
    %2417 = vmatprep.subr.mxu0 0.0
    %2418 = vmatpush1.msra.mxu0 0.0
    %2419 = vmatprep.subr.mxu0 0.0
    %2420 = vmatpush1.msra.mxu0 0.0
    %2421 = vmatprep.subr.mxu0 0.0
    %2422 = vmatpush1.msra.mxu0 0.0
    %2423 = vmatprep.subr.mxu0 0.0
    %2424 = vmatpush1.msra.mxu0 0.0
    %2425 = vmatprep.subr.mxu0 0.0
    %2426 = vmatpush1.msra.mxu0 0.0
    %2427 = vmatprep.subr.mxu0 0.0
    %2428 = vmatpush1.msra.mxu0 0.0
    %2429 = vmatprep.subr.mxu0 0.0
    %2430 = vmatpush1.msra.mxu0 0.0
    %2431 = vmatprep.subr.mxu0 0.0
    %2432 = vmatpush1.msra.mxu0 0.0
    %2433 = vmatprep.mubr.f32.mxu0 0.0
    %v2434 = vand.u32 %v134, 4294901760
    %v2435 = vsub.f32 %v134, %v2434
    %v2436 = vand.u32 %v2435, 4294901760
    %2437 = vmatmul.mubr.f32.gmra.mrb[0].mxu0 %v2436
    %v2438 = vpop.f32.mrb[0].mxu0
    %v2439 = vadd.f32 %v2353, %v2438
    %v2440 = vpop.f32.mrb[0].mxu0
    %v2441 = vadd.f32 %v2355, %v2440
    %2442 = vdwg.mxu0
    %v2443 = vand.u32 %v1412, 4294901760
    %v2444 = vsub.f32 %v1412, %v2443
    %v2445 = vand.u32 %v2444, 4294901760
    %2446 = vmatprep.subr.mxu0 %v2445
    %v2447 = vand.u32 %v1411, 4294901760
    %v2448 = vsub.f32 %v1411, %v2447
    %v2449 = vand.u32 %v2448, 4294901760
    %2450 = vmatpush1.msra.mxu0 %v2449
    %v2451 = vand.u32 %v1416, 4294901760
    %v2452 = vsub.f32 %v1416, %v2451
    %v2453 = vand.u32 %v2452, 4294901760
    %2454 = vmatprep.subr.mxu0 %v2453
    %v2455 = vand.u32 %v1415, 4294901760
    %v2456 = vsub.f32 %v1415, %v2455
    %v2457 = vand.u32 %v2456, 4294901760
    %2458 = vmatpush1.msra.mxu0 %v2457
    %v2459 = vand.u32 %v1420, 4294901760
    %v2460 = vsub.f32 %v1420, %v2459
    %v2461 = vand.u32 %v2460, 4294901760
    %2462 = vmatprep.subr.mxu0 %v2461
    %v2463 = vand.u32 %v1419, 4294901760
    %v2464 = vsub.f32 %v1419, %v2463
    %v2465 = vand.u32 %v2464, 4294901760
    %2466 = vmatpush1.msra.mxu0 %v2465
    %v2467 = vand.u32 %v1424, 4294901760
    %v2468 = vsub.f32 %v1424, %v2467
    %v2469 = vand.u32 %v2468, 4294901760
    %2470 = vmatprep.subr.mxu0 %v2469
    %v2471 = vand.u32 %v1423, 4294901760
    %v2472 = vsub.f32 %v1423, %v2471
    %v2473 = vand.u32 %v2472, 4294901760
    %2474 = vmatpush1.msra.mxu0 %v2473
    %v2475 = vand.u32 %v1428, 4294901760
    %v2476 = vsub.f32 %v1428, %v2475
    %v2477 = vand.u32 %v2476, 4294901760
    %2478 = vmatprep.subr.mxu0 %v2477
    %v2479 = vand.u32 %v1427, 4294901760
    %v2480 = vsub.f32 %v1427, %v2479
    %v2481 = vand.u32 %v2480, 4294901760
    %2482 = vmatpush1.msra.mxu0 %v2481
    %v2483 = vand.u32 %v1443, 4294901760
    %v2484 = vsub.f32 %v1443, %v2483
    %v2485 = vand.u32 %v2484, 4294901760
    %2486 = vmatprep.subr.mxu0 %v2485
    %v2487 = vand.u32 %v1440, 4294901760
    %v2488 = vsub.f32 %v1440, %v2487
    %v2489 = vand.u32 %v2488, 4294901760
    %2490 = vmatpush1.msra.mxu0 %v2489
    %2491 = vmatprep.subr.mxu0 0.0
    %2492 = vmatpush1.msra.mxu0 0.0
    %2493 = vmatprep.subr.mxu0 0.0
    %2494 = vmatpush1.msra.mxu0 0.0
    %2495 = vmatprep.subr.mxu0 0.0
    %2496 = vmatpush1.msra.mxu0 0.0
    %2497 = vmatprep.subr.mxu0 0.0
    %2498 = vmatpush1.msra.mxu0 0.0
    %2499 = vmatprep.subr.mxu0 0.0
    %2500 = vmatpush1.msra.mxu0 0.0
    %2501 = vmatprep.subr.mxu0 0.0
    %2502 = vmatpush1.msra.mxu0 0.0
    %2503 = vmatprep.subr.mxu0 0.0
    %2504 = vmatpush1.msra.mxu0 0.0
    %2505 = vmatprep.subr.mxu0 0.0
    %2506 = vmatpush1.msra.mxu0 0.0
    %2507 = vmatprep.subr.mxu0 0.0
    %2508 = vmatpush1.msra.mxu0 0.0
    %2509 = vmatprep.subr.mxu0 0.0
    %2510 = vmatpush1.msra.mxu0 0.0
    %2511 = vmatprep.subr.mxu0 0.0
    %2512 = vmatpush1.msra.mxu0 0.0
    %2513 = vmatprep.subr.mxu0 0.0
    %2514 = vmatpush1.msra.mxu0 0.0
    %2515 = vmatprep.subr.mxu0 0.0
    %2516 = vmatpush1.msra.mxu0 0.0
    %2517 = vmatprep.subr.mxu0 0.0
    %2518 = vmatpush1.msra.mxu0 0.0
    %2519 = vmatprep.subr.mxu0 0.0
    %2520 = vmatpush1.msra.mxu0 0.0
    %2521 = vmatprep.subr.mxu0 0.0
    %2522 = vmatpush1.msra.mxu0 0.0
    %2523 = vmatprep.subr.mxu0 0.0
    %2524 = vmatpush1.msra.mxu0 0.0
    %2525 = vmatprep.subr.mxu0 0.0
    %2526 = vmatpush1.msra.mxu0 0.0
    %2527 = vmatprep.subr.mxu0 0.0
    %2528 = vmatpush1.msra.mxu0 0.0
    %2529 = vmatprep.subr.mxu0 0.0
    %2530 = vmatpush1.msra.mxu0 0.0
    %2531 = vmatprep.subr.mxu0 0.0
    %2532 = vmatpush1.msra.mxu0 0.0
    %2533 = vmatprep.subr.mxu0 0.0
    %2534 = vmatpush1.msra.mxu0 0.0
    %2535 = vmatprep.subr.mxu0 0.0
    %2536 = vmatpush1.msra.mxu0 0.0
    %2537 = vmatprep.subr.mxu0 0.0
    %2538 = vmatpush1.msra.mxu0 0.0
    %2539 = vmatprep.subr.mxu0 0.0
    %2540 = vmatpush1.msra.mxu0 0.0
    %2541 = vmatprep.subr.mxu0 0.0
    %2542 = vmatpush1.msra.mxu0 0.0
    %2543 = vmatprep.mubr.f32.mxu0 0.0
    %v2544 = vand.u32 %v134, 4294901760
    %2545 = vmatmul.mubr.f32.gmra.mrb[0].mxu0 %v2544
    %v2546 = vpop.f32.mrb[0].mxu0
    %v2547 = vadd.f32 %v2439, %v2546
    %v2548 = vpop.f32.mrb[0].mxu0
    %v2549 = vadd.f32 %v2441, %v2548
    %2550 = vdwg.mxu0
    %v2551 = vand.u32 %v1412, 4294901760
    %2552 = vmatprep.subr.mxu0 %v2551
    %v2553 = vand.u32 %v1411, 4294901760
    %2554 = vmatpush1.msra.mxu0 %v2553
    %v2555 = vand.u32 %v1416, 4294901760
    %2556 = vmatprep.subr.mxu0 %v2555
    %v2557 = vand.u32 %v1415, 4294901760
    %2558 = vmatpush1.msra.mxu0 %v2557
    %v2559 = vand.u32 %v1420, 4294901760
    %2560 = vmatprep.subr.mxu0 %v2559
    %v2561 = vand.u32 %v1419, 4294901760
    %2562 = vmatpush1.msra.mxu0 %v2561
    %v2563 = vand.u32 %v1424, 4294901760
    %2564 = vmatprep.subr.mxu0 %v2563
    %v2565 = vand.u32 %v1423, 4294901760
    %2566 = vmatpush1.msra.mxu0 %v2565
    %v2567 = vand.u32 %v1428, 4294901760
    %2568 = vmatprep.subr.mxu0 %v2567
    %v2569 = vand.u32 %v1427, 4294901760
    %2570 = vmatpush1.msra.mxu0 %v2569
    %v2571 = vand.u32 %v1443, 4294901760
    %2572 = vmatprep.subr.mxu0 %v2571
    %v2573 = vand.u32 %v1440, 4294901760
    %2574 = vmatpush1.msra.mxu0 %v2573
    %2575 = vmatprep.subr.mxu0 0.0
    %2576 = vmatpush1.msra.mxu0 0.0
    %2577 = vmatprep.subr.mxu0 0.0
    %2578 = vmatpush1.msra.mxu0 0.0
    %2579 = vmatprep.subr.mxu0 0.0
    %2580 = vmatpush1.msra.mxu0 0.0
    %2581 = vmatprep.subr.mxu0 0.0
    %2582 = vmatpush1.msra.mxu0 0.0
    %2583 = vmatprep.subr.mxu0 0.0
    %2584 = vmatpush1.msra.mxu0 0.0
    %2585 = vmatprep.subr.mxu0 0.0
    %2586 = vmatpush1.msra.mxu0 0.0
    %2587 = vmatprep.subr.mxu0 0.0
    %2588 = vmatpush1.msra.mxu0 0.0
    %2589 = vmatprep.subr.mxu0 0.0
    %2590 = vmatpush1.msra.mxu0 0.0
    %2591 = vmatprep.subr.mxu0 0.0
    %2592 = vmatpush1.msra.mxu0 0.0
    %2593 = vmatprep.subr.mxu0 0.0
    %2594 = vmatpush1.msra.mxu0 0.0
    %2595 = vmatprep.subr.mxu0 0.0
    %2596 = vmatpush1.msra.mxu0 0.0
    %2597 = vmatprep.subr.mxu0 0.0
    %2598 = vmatpush1.msra.mxu0 0.0
    %2599 = vmatprep.subr.mxu0 0.0
    %2600 = vmatpush1.msra.mxu0 0.0
    %2601 = vmatprep.subr.mxu0 0.0
    %2602 = vmatpush1.msra.mxu0 0.0
    %2603 = vmatprep.subr.mxu0 0.0
    %2604 = vmatpush1.msra.mxu0 0.0
    %2605 = vmatprep.subr.mxu0 0.0
    %2606 = vmatpush1.msra.mxu0 0.0
    %2607 = vmatprep.subr.mxu0 0.0
    %2608 = vmatpush1.msra.mxu0 0.0
    %2609 = vmatprep.subr.mxu0 0.0
    %2610 = vmatpush1.msra.mxu0 0.0
    %2611 = vmatprep.subr.mxu0 0.0
    %2612 = vmatpush1.msra.mxu0 0.0
    %2613 = vmatprep.subr.mxu0 0.0
    %2614 = vmatpush1.msra.mxu0 0.0
    %2615 = vmatprep.subr.mxu0 0.0
    %2616 = vmatpush1.msra.mxu0 0.0
    %2617 = vmatprep.subr.mxu0 0.0
    %2618 = vmatpush1.msra.mxu0 0.0
    %2619 = vmatprep.subr.mxu0 0.0
    %2620 = vmatpush1.msra.mxu0 0.0
    %2621 = vmatprep.subr.mxu0 0.0
    %2622 = vmatpush1.msra.mxu0 0.0
    %2623 = vmatprep.subr.mxu0 0.0
    %2624 = vmatpush1.msra.mxu0 0.0
    %2625 = vmatprep.subr.mxu0 0.0
    %2626 = vmatpush1.msra.mxu0 0.0
    %2627 = vmatprep.mubr.f32.mxu0 0.0
    %v2628 = vand.u32 %v134, 4294901760
    %2629 = vmatmul.mubr.f32.gmra.mrb[0].mxu0 %v2628
    %v2630 = vpop.f32.mrb[0].mxu0
    %v2631 = vadd.f32 %v2547, %v2630
    %v2632 = vpop.f32.mrb[0].mxu0
    %v2633 = vadd.f32 %v2549, %v2632
    %2634 = vdwg.mxu0
    %s2635 = sadd.s32 0, 4
    %s2636 = smul.addr %s2635, 8
    %s2637 = scalar_lea.vmem [#allocation6], %s2636
    %2638 = vst [vmem:[%s2637] sm:$0x1f] %v2036
    %2639 = vst [vmem:[%s2637 + $0x8] sm:$0x1f] %v2038
    %2640 = vst [vmem:[%s2637 + $0x10] sm:$0x1f] %v2631
    %2641 = vst [vmem:[%s2637 + $0x18] sm:$0x1f] %v2633
    // Predicated region
    $region18: #{tpu_custom_call.1} parent=1 // pred_check
      _
    $region19: #{tpu_custom_call.1} parent=1 // pred_check_branch
      %2643 = sbr.rel (0) target = $region21
    $region20: #{tpu_custom_call.1} parent=1 // pred_region
      // Predicated region
      $region22: #{tpu_custom_call.1} parent=20 // pred_check
        _
      $region23: #{tpu_custom_call.1} parent=20 // pred_check_branch
        %2645 = sbr.rel (0) target = $region25
      $region24: #{tpu_custom_call.1} parent=20 // pred_region
        // Predicated region
        $region26: #{tpu_custom_call.1} parent=24 // pred_check
          _
        $region27: #{tpu_custom_call.1} parent=24 // pred_check_branch
          %2647 = sbr.rel (0) target = $region29
        $region28: #{tpu_custom_call.1} parent=24 // pred_region
          // Predicated region
          $region41: #{tpu_custom_call.1} parent=28 // pred_check
            _
          $region42: #{tpu_custom_call.1} parent=28 // pred_check_branch
            %2664 = sbr.rel (0) target = $region44
          $region43: #{tpu_custom_call.1} parent=28 // pred_region
            loop: start=0, step=1, limit=1
            $region45: #{tpu_custom_call.1} parent=43 // loop_pre_header
              _
            $region46: #{tpu_custom_call.1} parent=43 // loop_header
              %s2666 = sphi 0, %s2670
              %p2667 = scmp.ge.s32.totalorder %s2666, 1
              %s2671 = sphi [#allocation6], [#allocation6]
              %s2672 = sphi %s2, %s2
            $region47: #{tpu_custom_call.1} parent=43 // loop_header_branch
              %2669 = sbr.rel (%p2667) target = $region51
            $region48: #{tpu_custom_call.1} parent=43 // loop_body
              %v2673 = vld [vmem:[%s2671] sm:$0xff]
              %2674 = vst [vmem:[%s2672] sm:$0xff] %v2673
              %v2675 = vld [vmem:[%s2671 + $0x20] sm:$0xff]
              %2676 = vst [vmem:[%s2672 + $0x8] sm:$0xff] %v2675
            $region49: #{tpu_custom_call.1} parent=43 // loop_footer
              %s2670 = sadd.s32 1, %s2666
            $region50: #{tpu_custom_call.1} parent=43 // loop_footer_branch
              %2665 = sbr.rel target = $region46
            $region51: #{tpu_custom_call.1} parent=43 // loop_exit
              _
          $region44: #{tpu_custom_call.1} parent=28 // pred_fallthru
            _
          // Predicated region
          $region52: #{tpu_custom_call.1} parent=28 // pred_check
            _
          $region53: #{tpu_custom_call.1} parent=28 // pred_check_branch
            %2678 = sbr.rel target = $region55
          $region54: #{tpu_custom_call.1} parent=28 // pred_region
            _
          $region55: #{tpu_custom_call.1} parent=28 // pred_fallthru
            _
        $region29: #{tpu_custom_call.1} parent=24 // pred_fallthru
          _
        // Predicated region
        $region30: #{tpu_custom_call.1} parent=24 // pred_check
          _
        $region31: #{tpu_custom_call.1} parent=24 // pred_check_branch
          %2649 = sbr.rel target = $region33
        $region32: #{tpu_custom_call.1} parent=24 // pred_region
          loop: start=0, step=1, limit=1
          $region34: #{tpu_custom_call.1} parent=32 // loop_pre_header
            _
          $region35: #{tpu_custom_call.1} parent=32 // loop_header
            %s2652 = sphi 0, %s2656
            %p2653 = scmp.ge.s32.totalorder %s2652, 1
            %s2657 = sphi [#allocation6], [#allocation6]
            %s2658 = sphi %s2, %s2
          $region36: #{tpu_custom_call.1} parent=32 // loop_header_branch
            %2655 = sbr.rel (%p2653) target = $region40
          $region37: #{tpu_custom_call.1} parent=32 // loop_body
            %v2659 = vld [vmem:[%s2657] sm:$0xff]
            %2660 = vst [vmem:[%s2658] sm:$0xff] %v2659
            %v2661 = vld [vmem:[%s2657 + $0x20] sm:$0xff]
            %2662 = vst [vmem:[%s2658 + $0x8] sm:$0xff] %v2661
          $region38: #{tpu_custom_call.1} parent=32 // loop_footer
            %s2656 = sadd.s32 1, %s2652
          $region39: #{tpu_custom_call.1} parent=32 // loop_footer_branch
            %2651 = sbr.rel target = $region35
          $region40: #{tpu_custom_call.1} parent=32 // loop_exit
            _
        $region33: #{tpu_custom_call.1} parent=24 // pred_fallthru
          _
      $region25: #{tpu_custom_call.1} parent=20 // pred_fallthru
        _
      %2679 = vnop
    $region21: #{tpu_custom_call.1} parent=1 // pred_fallthru
      _
    // Predicated region
    $region56: #{tpu_custom_call.1} parent=1 // pred_check
      _
    $region57: #{tpu_custom_call.1} parent=1 // pred_check_branch
      %2681 = sbr.rel (0) target = $region59
    $region58: #{tpu_custom_call.1} parent=1 // pred_region
      _
    $region59: #{tpu_custom_call.1} parent=1 // pred_fallthru
      _
    %2682 = vsyncpa [#allocation3], 1
    %2683 = vsyncpa [#allocation5], 1

</llo_original>
